<compile_context>
chip_gen: v6e
topology: v6e:2x2x1
jax: 0.10.0
libtpu: 0.0.40
codegen_flags: <defaults>
</compile_context>

<pallas_src>
import math
from functools import partial

import jax
import jax.numpy as jnp
from jax import lax
from jax.experimental import pallas as pl
from jax.experimental.pallas import tpu as pltpu


# ----------------------------------------------------------------------------
# Pallas kernel: whole transformer layer for a block of Bt batch elements.
# ----------------------------------------------------------------------------
def transformer_layer_kernel(
    x_ref,      # (Bt*N, D)        compute dtype
    wq_ref,     # (D, H*d_k)       compute dtype, pre-scaled by 1/sqrt(d_k)
    wk_ref,     # (D, H*d_k)       compute dtype
    wv_ref,     # (D, H*d_v)       compute dtype
    wm_ref,     # (H*d_v, d_v)     compute dtype (merge Linear, original layout)
    w1_ref,     # (d_v, d_ff)      compute dtype
    w2_ref,     # (d_ff, d_v)      compute dtype
    vec_ref,    # (4, d_v) f32     rows = [bm, gamma, beta, b2]
    b1_ref,     # (1, d_ff) f32
    o_ref,      # (Bt*N, d_v)
    heads_ref,  # scratch: (Bt*N, H*d_v) compute dtype — per-head outs pre-merge
    *,
    batch_block: int,
    num_tokens: int,
    num_heads: int,
    d_k: int,
    d_v: int,
    approx_recip: bool,
):
    f32 = jnp.float32
    Bt, N = batch_block, num_tokens

    x = x_ref[...]                                   # (Bt*N, D)
    cdt = x.dtype

    # ---- fused QKV projections: one MXU matmul each for all heads ----------
    # f32 accumulation, then a single cast to the compute dtype so the
    # per-head score / PV matmuls run at MXU native (bf16) rate.
    q = jnp.dot(x, wq_ref[...], preferred_element_type=f32).astype(cdt)
    k = jnp.dot(x, wk_ref[...], preferred_element_type=f32).astype(cdt)
    v = jnp.dot(x, wv_ref[...], preferred_element_type=f32).astype(cdt)

    # leading-dim split only — the lane (last) dim is untouched.
    q3 = q.reshape(Bt, N, num_heads * d_k)
    k3 = k.reshape(Bt, N, num_heads * d_k)
    v3 = v.reshape(Bt, N, num_heads * d_v)

    # causal mask built once (1, N, N), broadcast over the batch block.
    row = lax.broadcasted_iota(jnp.int32, (N, N), 0)
    col = lax.broadcasted_iota(jnp.int32, (N, N), 1)
    causal = (col > row)[None, :, :]                 # strictly-upper triangle
    neg_big = f32(-1e30)                             # finite: no inf-inf NaNs

    vecs = vec_ref[...]                              # (4, d_v) f32
    bm = vecs[0:1]
    gamma = vecs[1:2]
    beta = vecs[2:3]
    b2 = vecs[3:4]

    # ---- attention: batched over Bt per head; merge done once after loop ---
    for h in range(num_heads):                       # static unroll, H small
        qh = q3[:, :, h * d_k:(h + 1) * d_k]         # (Bt, N, d_k)  cdt
        kh = k3[:, :, h * d_k:(h + 1) * d_k]         # (Bt, N, d_k)  cdt
        vh = v3[:, :, h * d_v:(h + 1) * d_v]         # (Bt, N, d_v)  cdt

        # scores: contract last dims, batch over Bt — no transposed copy.
        # 1/sqrt(d_k) is already folded into Wq.
        s = jnp.einsum('bnk,bmk->bnm', qh, kh,
                       preferred_element_type=f32)   # (Bt, N, N) f32
        s = jnp.where(causal, neg_big, s)

        # softmax along the last axis (f32)
        m = jnp.max(s, axis=-1, keepdims=True)
        e = jnp.exp(s - m)
        denom = jnp.sum(e, axis=-1, keepdims=True)
        p = (e * pl.reciprocal(denom, approx=approx_recip)).astype(cdt)

        ho = jnp.einsum('bnm,bmv->bnv', p, vh,
                        preferred_element_type=f32)  # (Bt, N, d_v) f32

        # stash head output at lane offset h*d_v (no sublane->lane reshape)
        heads_ref[:, h * d_v:(h + 1) * d_v] = (
            ho.reshape(Bt * N, d_v).astype(cdt))

    # one wide-K merge matmul (K = H*d_v) instead of H tiny matmuls
    att = jnp.dot(heads_ref[...], wm_ref[...],
                  preferred_element_type=f32) + bm   # (Bt*N, d_v) f32

    xf = x.astype(f32)                               # residual path in f32

    def layer_norm(z):                               # z: (Bt*N, d_v) f32
        mu = jnp.mean(z, axis=-1, keepdims=True)
        zc = z - mu
        var = jnp.mean(zc * zc, axis=-1, keepdims=True)
        return zc * lax.rsqrt(var + 1e-5) * gamma + beta

    att_n = layer_norm(att + xf)                     # post-attention LN

    # ---- feed-forward network ----------------------------------------------
    h1 = jnp.dot(att_n.astype(cdt), w1_ref[...],
                 preferred_element_type=f32) + b1_ref[...]
    h1 = jnp.maximum(h1, 0.0)
    fcn = jnp.dot(h1.astype(cdt), w2_ref[...],
                  preferred_element_type=f32) + b2

    # (bug-for-bug) the PyTorch module reuses the post-attention LN params.
    out = layer_norm(fcn + att_n)
    o_ref[...] = out.astype(o_ref.dtype)


# ----------------------------------------------------------------------------
# Wrapper helpers
# ----------------------------------------------------------------------------
def _pick_batch_block(B, N, compute_dtype):
    """Pick Bt: prefer >=2 grid steps, dtype-aligned sublanes, ~256 MXU rows."""
    itemsize = jnp.dtype(compute_dtype).itemsize
    sub = {4: 8, 2: 16, 1: 32}.get(itemsize, 8)
    target_rows = 256

    def score(bt):
        rows = bt * N
        return (
            (B // bt) >= 2,             # megacore sharding + x/out pipelining
            rows % sub == 0,            # sublane alignment for this dtype
            rows <= 2 * target_rows,    # keep the row tile VMEM-sane
            -abs(rows - target_rows),   # fill the MXU (~256 rows)
        )

    divisors = [d for d in range(1, B + 1) if B % d == 0]
    return max(divisors, key=score)


def _vmem_limit_bytes():
    """Scoped-VMEM limit with headroom; ~100 MiB v5e/v6e, ~56 MiB v7x."""
    try:
        cap = pltpu.get_tpu_info().vmem_capacity_bytes
    except Exception:
        cap = 64 << 20  # conservative fallback (v7x-sized)
    return int(min(cap - (8 << 20), 100 << 20))


# ----------------------------------------------------------------------------
# Wrapper
# ----------------------------------------------------------------------------
def transformer_layer(x, params, *, compute_dtype=jnp.bfloat16, batch_block=None):
    B, N, D = x.shape
    wq, wk, wv = params["wq"], params["wk"], params["wv"]     # (H, D, d_k/d_v)
    H, _, d_k = wq.shape
    d_v = wv.shape[-1]
    assert d_v == D, "residual add requires d_v == num_dim (as in the module)"
    wm, bm = params["wm"], params["bm"]                       # (H*d_v, d_v), (d_v,)
    gamma, beta = params["gamma"], params["beta"]             # (d_v,)
    w1, b1 = params["w1"], params["b1"]                       # (d_v, d_ff), (d_ff,)
    w2, b2 = params["w2"], params["b2"]                       # (d_ff, d_v), (d_v,)
    d_ff = w1.shape[-1]

    cdt = compute_dtype
    if batch_block is None:
        batch_block = _pick_batch_block(B, N, cdt)
    Bt = batch_block
    rows = Bt * N
    grid = (B // Bt,)

    inv_scale = 1.0 / math.sqrt(d_k)

    # host-side weight prep: stack heads, fold the score scale into Wq,
    # cast to the compute dtype (bf16 in the perf path).
    wq_s = (jnp.transpose(wq, (1, 0, 2)) * inv_scale).reshape(D, H * d_k).astype(cdt)
    wk_s = jnp.transpose(wk, (1, 0, 2)).reshape(D, H * d_k).astype(cdt)
    wv_s = jnp.transpose(wv, (1, 0, 2)).reshape(D, H * d_v).astype(cdt)
    wm_c = wm.astype(cdt)                                     # (H*d_v, d_v)
    w1_c = w1.astype(cdt)
    w2_c = w2.astype(cdt)

    # pack the small vectors: one (4, d_v) array + one (1, d_ff) array
    vec_dv = jnp.stack([bm, gamma, beta, b2]).astype(jnp.float32)   # (4, d_v)
    b1_2 = b1.reshape(1, d_ff).astype(jnp.float32)

    # flatten batch*tokens so every grid step works on a (rows, D) slab
    x2 = x.reshape(B * N, D).astype(cdt)

    # constant-index-map inputs never change across the grid: single-buffer.
    def const_spec(shape):
        return pl.BlockSpec(shape, lambda b: (0,) * len(shape),
                            pipeline_mode=pl.Buffered(1))

    kernel = partial(
        transformer_layer_kernel,
        batch_block=Bt,
        num_tokens=N,
        num_heads=H,
        d_k=d_k,
        d_v=d_v,
        approx_recip=(cdt != jnp.float32),
    )

    out2 = pl.pallas_call(
        kernel,
        out_shape=jax.ShapeDtypeStruct((B * N, d_v), x.dtype),
        grid_spec=pltpu.PrefetchScalarGridSpec(
            num_scalar_prefetch=0,
            grid=grid,
            in_specs=[
                pl.BlockSpec((rows, D), lambda b: (b, 0)),   # x (flattened)
                const_spec((D, H * d_k)),                    # wq (scaled, stacked)
                const_spec((D, H * d_k)),                    # wk (stacked)
                const_spec((D, H * d_v)),                    # wv (stacked)
                const_spec((H * d_v, d_v)),                  # wm (merge)
                const_spec((d_v, d_ff)),                     # w1
                const_spec((d_ff, d_v)),                     # w2
                const_spec((4, d_v)),                        # [bm, gamma, beta, b2]
                const_spec((1, d_ff)),                       # b1
            ],
            out_specs=pl.BlockSpec((rows, d_v), lambda b: (b, 0)),
            scratch_shapes=[pltpu.VMEM((rows, H * d_v), cdt)],
        ),
        compiler_params=pltpu.CompilerParams(
            dimension_semantics=("parallel",),
            vmem_limit_bytes=_vmem_limit_bytes(),
        ),
    )(x2, wq_s, wk_s, wv_s, wm_c, w1_c, w2_c, vec_dv, b1_2)

    return out2.reshape(B, N, d_v)


# ----------------------------------------------------------------------------
# Pure-JAX f32 reference (mirrors the PyTorch forward exactly)
# ----------------------------------------------------------------------------
def transformer_layer_ref(x, params):
    H = params["wq"].shape[0]
    d_k = params["wq"].shape[-1]
    scale = math.sqrt(d_k)
    N = x.shape[1]
    mask = jnp.triu(jnp.full((N, N), -jnp.inf, jnp.float32), 1)

    heads = []
    for h in range(H):
        q = x @ params["wq"][h]
        k = x @ params["wk"][h]
        v = x @ params["wv"][h]
        s = (q @ jnp.swapaxes(k, -1, -2)) / scale + mask
        p = jax.nn.softmax(s, axis=-1)
        heads.append(p @ v)
    concat = jnp.concatenate(heads, axis=-1)
    att = concat @ params["wm"] + params["bm"]

    def ln(z):
        mu = jnp.mean(z, axis=-1, keepdims=True)
        var = jnp.mean((z - mu) ** 2, axis=-1, keepdims=True)
        return (z - mu) / jnp.sqrt(var + 1e-5) * params["gamma"] + params["beta"]

    att_n = ln(att + x)
    h1 = jnp.maximum(att_n @ params["w1"] + params["b1"], 0.0)
    fcn = h1 @ params["w2"] + params["b2"]
    return ln(fcn + att_n)


# ----------------------------------------------------------------------------
# Deterministic parameter init (shapes per TransformerLayer.__init__)
# ----------------------------------------------------------------------------
def init_params(key, num_dim, heads, d_k, d_v, d_ff):
    ks = jax.random.split(key, 10)

    def uni(k, shape, fan_in):
        bound = 1.0 / math.sqrt(fan_in)
        return jax.random.uniform(k, shape, jnp.float32, -bound, bound)

    return {
        # per-head projections (stored as (in, out) = transposed torch Linear.weight)
        "wq": uni(ks[0], (heads, num_dim, d_k), num_dim),
        "wk": uni(ks[1], (heads, num_dim, d_k), num_dim),
        "wv": uni(ks[2], (heads, num_dim, d_v), num_dim),
        # merge Linear(heads*d_v, d_v)
        "wm": uni(ks[3], (heads * d_v, d_v), heads * d_v),
        "bm": uni(ks[4], (d_v,), heads * d_v),
        # post-attention LayerNorm(d_v) — reused for the post-FCN norm too
        "gamma": jnp.ones((d_v,), jnp.float32),
        "beta": jnp.zeros((d_v,), jnp.float32),
        # FFN: Linear(d_v, d_ff) -> ReLU -> Linear(d_ff, d_v)
        "w1": uni(ks[5], (d_v, d_ff), d_v),
        "b1": uni(ks[6], (d_ff,), d_v),
        "w2": uni(ks[7], (d_ff, d_v), d_ff),
        "b2": uni(ks[8], (d_v,), d_ff),
    }


if __name__ == "__main__":
    B, N, D = 2, 8, 32           # batch, tokens, embedding dim
    heads, d_k, d_v, d_ff = 2, D, D, 4 * D

    key = jax.random.PRNGKey(0)
    kx, kp = jax.random.split(key)
    x = jax.random.normal(kx, (B, N, D), jnp.float32)
    params = init_params(kp, D, heads, d_k, d_v, d_ff)

    ref = transformer_layer_ref(x, params)

    # accuracy path (f32 everywhere): must match the f32 reference tightly
    out_f32 = jax.block_until_ready(
        transformer_layer(x, params, compute_dtype=jnp.float32))
    assert out_f32.shape == (B, N, d_v)
    assert jnp.allclose(out_f32, ref, atol=1e-4, rtol=1e-4), (
        f"f32 max abs diff = {jnp.max(jnp.abs(out_f32 - ref))}"
    )

    # performance path (bf16 operands, f32 accumulation): looser tolerance
    out_bf16 = jax.block_until_ready(
        transformer_layer(x, params, compute_dtype=jnp.bfloat16))
    assert out_bf16.shape == (B, N, d_v)
    assert jnp.allclose(out_bf16, ref, atol=5e-2, rtol=5e-2), (
        f"bf16 max abs diff = {jnp.max(jnp.abs(out_bf16 - ref))}"
    )

    print("KERNEL_OK")
</pallas_src>

<mosaic_0001>
module attributes {stable_mosaic.version = 11 : i64} {
  func.func @transformer_layer_kernel(%arg0: i32, %arg1: memref<8x32xf32, #tpu.memory_space<vmem>>, %arg2: memref<32x64xf32, #tpu.memory_space<vmem>>, %arg3: memref<32x64xf32, #tpu.memory_space<vmem>>, %arg4: memref<32x64xf32, #tpu.memory_space<vmem>>, %arg5: memref<64x32xf32, #tpu.memory_space<vmem>>, %arg6: memref<32x128xf32, #tpu.memory_space<vmem>>, %arg7: memref<128x32xf32, #tpu.memory_space<vmem>>, %arg8: memref<4x32xf32, #tpu.memory_space<vmem>>, %arg9: memref<1x128xf32, #tpu.memory_space<vmem>>, %arg10: memref<8x32xf32, #tpu.memory_space<vmem>>, %arg11: memref<8x64xf32, #tpu.memory_space<vmem>>) attributes {dimension_semantics = [#tpu.dimension_semantics<parallel>], iteration_bounds = array<i64: 2>, scalar_prefetch = 0 : i64, scratch_operands = 1 : i64, tpu.core_type = #tpu.core_type<tc>, window_params = [{transform_indices = @transform_0, window_bounds = array<i64: 8, 32>}, {pipeline_mode = #tpu.pipeline_mode<synchronous>, transform_indices = @transform_1, window_bounds = array<i64: 32, 64>}, {pipeline_mode = #tpu.pipeline_mode<synchronous>, transform_indices = @transform_2, window_bounds = array<i64: 32, 64>}, {pipeline_mode = #tpu.pipeline_mode<synchronous>, transform_indices = @transform_3, window_bounds = array<i64: 32, 64>}, {pipeline_mode = #tpu.pipeline_mode<synchronous>, transform_indices = @transform_4, window_bounds = array<i64: 64, 32>}, {pipeline_mode = #tpu.pipeline_mode<synchronous>, transform_indices = @transform_5, window_bounds = array<i64: 32, 128>}, {pipeline_mode = #tpu.pipeline_mode<synchronous>, transform_indices = @transform_6, window_bounds = array<i64: 128, 32>}, {pipeline_mode = #tpu.pipeline_mode<synchronous>, transform_indices = @transform_7, window_bounds = array<i64: 4, 32>}, {pipeline_mode = #tpu.pipeline_mode<synchronous>, transform_indices = @transform_8, window_bounds = array<i64: 1, 128>}, {transform_indices = @transform_9, window_bounds = array<i64: 8, 32>}]} {
    %c0 = arith.constant 0 : index
    %c0_0 = arith.constant 0 : index
    %0 = vector.load %arg1[%c0, %c0_0] : memref<8x32xf32, #tpu.memory_space<vmem>>, vector<8x32xf32>
    %c0_1 = arith.constant 0 : index
    %c0_2 = arith.constant 0 : index
    %1 = vector.load %arg2[%c0_1, %c0_2] : memref<32x64xf32, #tpu.memory_space<vmem>>, vector<32x64xf32>
    %cst = arith.constant dense<0.000000e+00> : vector<8x64xf32>
    %2 = tpu.matmul %0, %1, %cst {dimension_numbers = #tpu.dot_dimension_numbers<[1], [0], [0], [1], [0, 0, 1, 1], [], []>} : vector<8x32xf32>, vector<32x64xf32>, vector<8x64xf32> -> vector<8x64xf32>
    %c0_3 = arith.constant 0 : index
    %c0_4 = arith.constant 0 : index
    %3 = vector.load %arg3[%c0_3, %c0_4] : memref<32x64xf32, #tpu.memory_space<vmem>>, vector<32x64xf32>
    %cst_5 = arith.constant dense<0.000000e+00> : vector<8x64xf32>
    %4 = tpu.matmul %0, %3, %cst_5 {dimension_numbers = #tpu.dot_dimension_numbers<[1], [0], [0], [1], [0, 0, 1, 1], [], []>} : vector<8x32xf32>, vector<32x64xf32>, vector<8x64xf32> -> vector<8x64xf32>
    %c0_6 = arith.constant 0 : index
    %c0_7 = arith.constant 0 : index
    %5 = vector.load %arg4[%c0_6, %c0_7] : memref<32x64xf32, #tpu.memory_space<vmem>>, vector<32x64xf32>
    %cst_8 = arith.constant dense<0.000000e+00> : vector<8x64xf32>
    %6 = tpu.matmul %0, %5, %cst_8 {dimension_numbers = #tpu.dot_dimension_numbers<[1], [0], [0], [1], [0, 0, 1, 1], [], []>} : vector<8x32xf32>, vector<32x64xf32>, vector<8x64xf32> -> vector<8x64xf32>
    %7 = vector.shape_cast %2 : vector<8x64xf32> to vector<1x8x64xf32>
    %8 = vector.shape_cast %4 : vector<8x64xf32> to vector<1x8x64xf32>
    %9 = vector.shape_cast %6 : vector<8x64xf32> to vector<1x8x64xf32>
    %10 = tpu.iota {dimensions = array<i32: 0>} : vector<8x8xi32>
    %11 = tpu.iota {dimensions = array<i32: 1>} : vector<8x8xi32>
    %12 = arith.cmpi sgt, %11, %10 : vector<8x8xi32>
    %13 = vector.shape_cast %12 : vector<8x8xi1> to vector<1x8x8xi1>
    %c0_9 = arith.constant 0 : index
    %c0_10 = arith.constant 0 : index
    %14 = vector.load %arg8[%c0_9, %c0_10] : memref<4x32xf32, #tpu.memory_space<vmem>>, vector<4x32xf32>
    %15 = vector.extract_strided_slice %14 {offsets = [0, 0], sizes = [1, 32], strides = [1, 1]} : vector<4x32xf32> to vector<1x32xf32>
    %16 = vector.extract_strided_slice %14 {offsets = [1, 0], sizes = [1, 32], strides = [1, 1]} : vector<4x32xf32> to vector<1x32xf32>
    %17 = vector.extract_strided_slice %14 {offsets = [2, 0], sizes = [1, 32], strides = [1, 1]} : vector<4x32xf32> to vector<1x32xf32>
    %18 = vector.extract_strided_slice %14 {offsets = [3, 0], sizes = [1, 32], strides = [1, 1]} : vector<4x32xf32> to vector<1x32xf32>
    %19 = vector.extract_strided_slice %7 {offsets = [0, 0, 0], sizes = [1, 8, 32], strides = [1, 1, 1]} : vector<1x8x64xf32> to vector<1x8x32xf32>
    %20 = vector.extract_strided_slice %8 {offsets = [0, 0, 0], sizes = [1, 8, 32], strides = [1, 1, 1]} : vector<1x8x64xf32> to vector<1x8x32xf32>
    %21 = vector.extract_strided_slice %9 {offsets = [0, 0, 0], sizes = [1, 8, 32], strides = [1, 1, 1]} : vector<1x8x64xf32> to vector<1x8x32xf32>
    "tpu.trace_start"() <{level = 10 : i32, message = "bnk,bmk->bnm"}> : () -> ()
    %cst_11 = arith.constant dense<0.000000e+00> : vector<1x8x8xf32>
    %22 = tpu.matmul %19, %20, %cst_11 {dimension_numbers = #tpu.dot_dimension_numbers<[2], [2], [1], [1], [0, 0, 0, 1, 1, 1], [0], [0]>} : vector<1x8x32xf32>, vector<1x8x32xf32>, vector<1x8x8xf32> -> vector<1x8x8xf32>
    %cst_12 = arith.constant -1.000000e+30 : f32
    "tpu.trace_stop"() : () -> ()
    %23 = vector.broadcast %cst_12 : f32 to vector<1x8x8xf32>
    %24 = arith.select %13, %23, %22 : vector<1x8x8xi1>, vector<1x8x8xf32>
    %cst_13 = arith.constant dense<0xFF800000> : vector<1x8xf32>
    %25 = vector.multi_reduction <maximumf>, %24, %cst_13 [2] : vector<1x8x8xf32> to vector<1x8xf32>
    %26 = vector.shape_cast %25 : vector<1x8xf32> to vector<1x8x1xf32>
    %27 = vector.broadcast %26 : vector<1x8x1xf32> to vector<1x8x8xf32>
    %28 = arith.subf %24, %27 : vector<1x8x8xf32>
    %29 = math.exp %28 : vector<1x8x8xf32>
    %cst_14 = arith.constant dense<0.000000e+00> : vector<1x8xf32>
    %30 = vector.multi_reduction <add>, %29, %cst_14 [2] : vector<1x8x8xf32> to vector<1x8xf32>
    %31 = vector.shape_cast %30 : vector<1x8xf32> to vector<1x8x1xf32>
    %32 = tpu.reciprocal %31 : vector<1x8x1xf32> -> vector<1x8x1xf32>
    %33 = vector.broadcast %32 : vector<1x8x1xf32> to vector<1x8x8xf32>
    %34 = arith.mulf %29, %33 : vector<1x8x8xf32>
    "tpu.trace_start"() <{level = 10 : i32, message = "bnm,bmv->bnv"}> : () -> ()
    %cst_15 = arith.constant dense<0.000000e+00> : vector<1x8x32xf32>
    %35 = tpu.matmul %34, %21, %cst_15 {dimension_numbers = #tpu.dot_dimension_numbers<[2], [1], [1], [2], [0, 0, 0, 1, 1, 2], [0], [0]>} : vector<1x8x8xf32>, vector<1x8x32xf32>, vector<1x8x32xf32> -> vector<1x8x32xf32>
    "tpu.trace_stop"() : () -> ()
    %36 = vector.shape_cast %35 : vector<1x8x32xf32> to vector<8x32xf32>
    %c0_16 = arith.constant 0 : index
    %c0_17 = arith.constant 0 : index
    %37 = vector.load %arg11[%c0_16, %c0_17] : memref<8x64xf32, #tpu.memory_space<vmem>>, vector<8x32xf32>
    tpu.vector_store %arg11[%c0_16, %c0_17], %36 {strides = array<i32>} : memref<8x64xf32, #tpu.memory_space<vmem>>, vector<8x32xf32>,
    %38 = vector.extract_strided_slice %7 {offsets = [0, 0, 32], sizes = [1, 8, 32], strides = [1, 1, 1]} : vector<1x8x64xf32> to vector<1x8x32xf32>
    %39 = vector.extract_strided_slice %8 {offsets = [0, 0, 32], sizes = [1, 8, 32], strides = [1, 1, 1]} : vector<1x8x64xf32> to vector<1x8x32xf32>
    %40 = vector.extract_strided_slice %9 {offsets = [0, 0, 32], sizes = [1, 8, 32], strides = [1, 1, 1]} : vector<1x8x64xf32> to vector<1x8x32xf32>
    "tpu.trace_start"() <{level = 10 : i32, message = "bnk,bmk->bnm"}> : () -> ()
    %cst_18 = arith.constant dense<0.000000e+00> : vector<1x8x8xf32>
    %41 = tpu.matmul %38, %39, %cst_18 {dimension_numbers = #tpu.dot_dimension_numbers<[2], [2], [1], [1], [0, 0, 0, 1, 1, 1], [0], [0]>} : vector<1x8x32xf32>, vector<1x8x32xf32>, vector<1x8x8xf32> -> vector<1x8x8xf32>
    %cst_19 = arith.constant -1.000000e+30 : f32
    "tpu.trace_stop"() : () -> ()
    %42 = vector.broadcast %cst_19 : f32 to vector<1x8x8xf32>
    %43 = arith.select %13, %42, %41 : vector<1x8x8xi1>, vector<1x8x8xf32>
    %cst_20 = arith.constant dense<0xFF800000> : vector<1x8xf32>
    %44 = vector.multi_reduction <maximumf>, %43, %cst_20 [2] : vector<1x8x8xf32> to vector<1x8xf32>
    %45 = vector.shape_cast %44 : vector<1x8xf32> to vector<1x8x1xf32>
    %46 = vector.broadcast %45 : vector<1x8x1xf32> to vector<1x8x8xf32>
    %47 = arith.subf %43, %46 : vector<1x8x8xf32>
    %48 = math.exp %47 : vector<1x8x8xf32>
    %cst_21 = arith.constant dense<0.000000e+00> : vector<1x8xf32>
    %49 = vector.multi_reduction <add>, %48, %cst_21 [2] : vector<1x8x8xf32> to vector<1x8xf32>
    %50 = vector.shape_cast %49 : vector<1x8xf32> to vector<1x8x1xf32>
    %51 = tpu.reciprocal %50 : vector<1x8x1xf32> -> vector<1x8x1xf32>
    %52 = vector.broadcast %51 : vector<1x8x1xf32> to vector<1x8x8xf32>
    %53 = arith.mulf %48, %52 : vector<1x8x8xf32>
    "tpu.trace_start"() <{level = 10 : i32, message = "bnm,bmv->bnv"}> : () -> ()
    %cst_22 = arith.constant dense<0.000000e+00> : vector<1x8x32xf32>
    %54 = tpu.matmul %53, %40, %cst_22 {dimension_numbers = #tpu.dot_dimension_numbers<[2], [1], [1], [2], [0, 0, 0, 1, 1, 2], [0], [0]>} : vector<1x8x8xf32>, vector<1x8x32xf32>, vector<1x8x32xf32> -> vector<1x8x32xf32>
    "tpu.trace_stop"() : () -> ()
    %55 = vector.shape_cast %54 : vector<1x8x32xf32> to vector<8x32xf32>
    %c0_23 = arith.constant 0 : index
    %c32 = arith.constant 32 : index
    %56 = vector.load %arg11[%c0_23, %c32] : memref<8x64xf32, #tpu.memory_space<vmem>>, vector<8x32xf32>
    tpu.vector_store %arg11[%c0_23, %c32], %55 {strides = array<i32>} : memref<8x64xf32, #tpu.memory_space<vmem>>, vector<8x32xf32>,
    %c0_24 = arith.constant 0 : index
    %c0_25 = arith.constant 0 : index
    %57 = vector.load %arg11[%c0_24, %c0_25] : memref<8x64xf32, #tpu.memory_space<vmem>>, vector<8x64xf32>
    %c0_26 = arith.constant 0 : index
    %c0_27 = arith.constant 0 : index
    %58 = vector.load %arg5[%c0_26, %c0_27] : memref<64x32xf32, #tpu.memory_space<vmem>>, vector<64x32xf32>
    %cst_28 = arith.constant dense<0.000000e+00> : vector<8x32xf32>
    %59 = tpu.matmul %57, %58, %cst_28 {dimension_numbers = #tpu.dot_dimension_numbers<[1], [0], [0], [1], [0, 0, 1, 1], [], []>} : vector<8x64xf32>, vector<64x32xf32>, vector<8x32xf32> -> vector<8x32xf32>
    %60 = vector.broadcast %15 : vector<1x32xf32> to vector<8x32xf32>
    %61 = arith.addf %59, %60 : vector<8x32xf32>
    %62 = arith.addf %61, %0 : vector<8x32xf32>
    %cst_29 = arith.constant dense<0.000000e+00> : vector<8xf32>
    %63 = vector.multi_reduction <add>, %62, %cst_29 [1] : vector<8x32xf32> to vector<8xf32>
    %64 = vector.shape_cast %63 : vector<8xf32> to vector<8x1xf32>
    %cst_30 = arith.constant 3.200000e+01 : f32
    %65 = vector.broadcast %cst_30 : f32 to vector<8x1xf32>
    %66 = arith.divf %64, %65 : vector<8x1xf32>
    %67 = vector.broadcast %66 : vector<8x1xf32> to vector<8x32xf32>
    %68 = arith.subf %62, %67 : vector<8x32xf32>
    %69 = arith.mulf %68, %68 : vector<8x32xf32>
    %cst_31 = arith.constant dense<0.000000e+00> : vector<8xf32>
    %70 = vector.multi_reduction <add>, %69, %cst_31 [1] : vector<8x32xf32> to vector<8xf32>
    %71 = vector.shape_cast %70 : vector<8xf32> to vector<8x1xf32>
    %cst_32 = arith.constant 3.200000e+01 : f32
    %72 = vector.broadcast %cst_32 : f32 to vector<8x1xf32>
    %73 = arith.divf %71, %72 : vector<8x1xf32>
    %cst_33 = arith.constant 9.99999974E-6 : f32
    %74 = vector.broadcast %cst_33 : f32 to vector<8x1xf32>
    %75 = arith.addf %73, %74 : vector<8x1xf32>
    %76 = math.rsqrt %75 : vector<8x1xf32>
    %77 = vector.broadcast %76 : vector<8x1xf32> to vector<8x32xf32>
    %78 = arith.mulf %68, %77 : vector<8x32xf32>
    %79 = vector.broadcast %16 : vector<1x32xf32> to vector<8x32xf32>
    %80 = arith.mulf %78, %79 : vector<8x32xf32>
    %81 = vector.broadcast %17 : vector<1x32xf32> to vector<8x32xf32>
    %82 = arith.addf %80, %81 : vector<8x32xf32>
    %c0_34 = arith.constant 0 : index
    %c0_35 = arith.constant 0 : index
    %83 = vector.load %arg6[%c0_34, %c0_35] : memref<32x128xf32, #tpu.memory_space<vmem>>, vector<32x128xf32>
    %cst_36 = arith.constant dense<0.000000e+00> : vector<8x128xf32>
    %84 = tpu.matmul %82, %83, %cst_36 {dimension_numbers = #tpu.dot_dimension_numbers<[1], [0], [0], [1], [0, 0, 1, 1], [], []>} : vector<8x32xf32>, vector<32x128xf32>, vector<8x128xf32> -> vector<8x128xf32>
    %c0_37 = arith.constant 0 : index
    %c0_38 = arith.constant 0 : index
    %85 = vector.load %arg9[%c0_37, %c0_38] : memref<1x128xf32, #tpu.memory_space<vmem>>, vector<1x128xf32>
    %86 = vector.broadcast %85 : vector<1x128xf32> to vector<8x128xf32>
    %87 = arith.addf %84, %86 : vector<8x128xf32>
    %cst_39 = arith.constant 0.000000e+00 : f32
    %88 = vector.broadcast %cst_39 : f32 to vector<8x128xf32>
    %89 = arith.maximumf %87, %88 : vector<8x128xf32>
    %c0_40 = arith.constant 0 : index
    %c0_41 = arith.constant 0 : index
    %90 = vector.load %arg7[%c0_40, %c0_41] : memref<128x32xf32, #tpu.memory_space<vmem>>, vector<128x32xf32>
    %cst_42 = arith.constant dense<0.000000e+00> : vector<8x32xf32>
    %91 = tpu.matmul %89, %90, %cst_42 {dimension_numbers = #tpu.dot_dimension_numbers<[1], [0], [0], [1], [0, 0, 1, 1], [], []>} : vector<8x128xf32>, vector<128x32xf32>, vector<8x32xf32> -> vector<8x32xf32>
    %92 = vector.broadcast %18 : vector<1x32xf32> to vector<8x32xf32>
    %93 = arith.addf %91, %92 : vector<8x32xf32>
    %94 = arith.addf %93, %82 : vector<8x32xf32>
    %cst_43 = arith.constant dense<0.000000e+00> : vector<8xf32>
    %95 = vector.multi_reduction <add>, %94, %cst_43 [1] : vector<8x32xf32> to vector<8xf32>
    %96 = vector.shape_cast %95 : vector<8xf32> to vector<8x1xf32>
    %cst_44 = arith.constant 3.200000e+01 : f32
    %97 = vector.broadcast %cst_44 : f32 to vector<8x1xf32>
    %98 = arith.divf %96, %97 : vector<8x1xf32>
    %99 = vector.broadcast %98 : vector<8x1xf32> to vector<8x32xf32>
    %100 = arith.subf %94, %99 : vector<8x32xf32>
    %101 = arith.mulf %100, %100 : vector<8x32xf32>
    %cst_45 = arith.constant dense<0.000000e+00> : vector<8xf32>
    %102 = vector.multi_reduction <add>, %101, %cst_45 [1] : vector<8x32xf32> to vector<8xf32>
    %103 = vector.shape_cast %102 : vector<8xf32> to vector<8x1xf32>
    %cst_46 = arith.constant 3.200000e+01 : f32
    %104 = vector.broadcast %cst_46 : f32 to vector<8x1xf32>
    %105 = arith.divf %103, %104 : vector<8x1xf32>
    %cst_47 = arith.constant 9.99999974E-6 : f32
    %106 = vector.broadcast %cst_47 : f32 to vector<8x1xf32>
    %107 = arith.addf %105, %106 : vector<8x1xf32>
    %108 = math.rsqrt %107 : vector<8x1xf32>
    %109 = vector.broadcast %108 : vector<8x1xf32> to vector<8x32xf32>
    %110 = arith.mulf %100, %109 : vector<8x32xf32>
    %111 = vector.broadcast %16 : vector<1x32xf32> to vector<8x32xf32>
    %112 = arith.mulf %110, %111 : vector<8x32xf32>
    %113 = vector.broadcast %17 : vector<1x32xf32> to vector<8x32xf32>
    %114 = arith.addf %112, %113 : vector<8x32xf32>
    %c0_48 = arith.constant 0 : index
    %c0_49 = arith.constant 0 : index
    %115 = vector.load %arg10[%c0_48, %c0_49] : memref<8x32xf32, #tpu.memory_space<vmem>>, vector<8x32xf32>
    tpu.vector_store %arg10[%c0_48, %c0_49], %114 {strides = array<i32>} : memref<8x32xf32, #tpu.memory_space<vmem>>, vector<8x32xf32>,
    return
  }
  func.func @transform_0(%arg0: i32) -> (i32, i32) {
    %c0_i32 = arith.constant 0 : i32
    %c0_i32_0 = arith.constant 0 : i32
    return %arg0, %c0_i32 : i32, i32
  }
  func.func @transform_1(%arg0: i32) -> (i32, i32) {
    %c0_i32 = arith.constant 0 : i32
    %c0_i32_0 = arith.constant 0 : i32
    %c0_i32_1 = arith.constant 0 : i32
    return %c0_i32, %c0_i32_0 : i32, i32
  }
  func.func @transform_2(%arg0: i32) -> (i32, i32) {
    %c0_i32 = arith.constant 0 : i32
    %c0_i32_0 = arith.constant 0 : i32
    %c0_i32_1 = arith.constant 0 : i32
    return %c0_i32, %c0_i32_0 : i32, i32
  }
  func.func @transform_3(%arg0: i32) -> (i32, i32) {
    %c0_i32 = arith.constant 0 : i32
    %c0_i32_0 = arith.constant 0 : i32
    %c0_i32_1 = arith.constant 0 : i32
    return %c0_i32, %c0_i32_0 : i32, i32
  }
  func.func @transform_4(%arg0: i32) -> (i32, i32) {
    %c0_i32 = arith.constant 0 : i32
    %c0_i32_0 = arith.constant 0 : i32
    %c0_i32_1 = arith.constant 0 : i32
    return %c0_i32, %c0_i32_0 : i32, i32
  }
  func.func @transform_5(%arg0: i32) -> (i32, i32) {
    %c0_i32 = arith.constant 0 : i32
    %c0_i32_0 = arith.constant 0 : i32
    %c0_i32_1 = arith.constant 0 : i32
    return %c0_i32, %c0_i32_0 : i32, i32
  }
  func.func @transform_6(%arg0: i32) -> (i32, i32) {
    %c0_i32 = arith.constant 0 : i32
    %c0_i32_0 = arith.constant 0 : i32
    %c0_i32_1 = arith.constant 0 : i32
    return %c0_i32, %c0_i32_0 : i32, i32
  }
  func.func @transform_7(%arg0: i32) -> (i32, i32) {
    %c0_i32 = arith.constant 0 : i32
    %c0_i32_0 = arith.constant 0 : i32
    %c0_i32_1 = arith.constant 0 : i32
    return %c0_i32, %c0_i32_0 : i32, i32
  }
  func.func @transform_8(%arg0: i32) -> (i32, i32) {
    %c0_i32 = arith.constant 0 : i32
    %c0_i32_0 = arith.constant 0 : i32
    %c0_i32_1 = arith.constant 0 : i32
    return %c0_i32, %c0_i32_0 : i32, i32
  }
  func.func @transform_9(%arg0: i32) -> (i32, i32) {
    %c0_i32 = arith.constant 0 : i32
    %c0_i32_0 = arith.constant 0 : i32
    return %arg0, %c0_i32 : i32, i32
  }
}

</mosaic_0001>

<llo_original>
// kernel: tpu_custom_call.1
$region0: #{tpu_custom_call.1}
  #allocation0 [shape = 'u32[]', space=smem, size = 0x4, offset = 0x4, fixed_abs, tag = 'smem constant byte address 0x4 - core index']
  #allocation1 [shape = 'u32[144,128]{1,0:T(1,128)}', space=vmem, size = 0x12000, scoped, tag = 'internal scratch']
  #allocation2 [shape = 'f32[8,64]{1,0:T(8,128)}', space=vmem, size = 0x1000, scoped, tag = 'scratch operand']
  %s0 = inlined_call_operand.vmem [shape: f32[16,32], index: 0, kind: input, shape index: {}]
  %s1 = inlined_call_operand.vmem [shape: f32[32,64], index: 1, kind: input, shape index: {}]
  %s2 = inlined_call_operand.vmem [shape: f32[32,64], index: 2, kind: input, shape index: {}]
  %s3 = inlined_call_operand.vmem [shape: f32[32,64], index: 3, kind: input, shape index: {}]
  %s4 = inlined_call_operand.vmem [shape: f32[64,32], index: 4, kind: input, shape index: {}]
  %s5 = inlined_call_operand.vmem [shape: f32[32,128], index: 5, kind: input, shape index: {}]
  %s6 = inlined_call_operand.vmem [shape: f32[128,32], index: 6, kind: input, shape index: {}]
  %s7 = inlined_call_operand.vmem [shape: f32[4,32], index: 7, kind: input, shape index: {}]
  %s8 = inlined_call_operand.vmem [shape: f32[1,128], index: 8, kind: input, shape index: {}]
  %s9 = inlined_call_operand.hbm [shape: f32[16,32], index: 9, kind: output, shape index: {}]
  %s10 = sld [smem:[#allocation0]]
  $region69: #{tpu_custom_call.1} parent=0
    _
  %s12 = ssub.s32 1, %s10
  %s13 = scalar_select 0, %s12, %s10
  $region1: #{tpu_custom_call.1} parent=0
    #allocation3 [shape = 'u8[8192]{0}', space=vmem, size = 0x2000, scoped, tag = 'output window, operand 0']
    #allocation4 [shape = 's32[2]{0}', space=sflag, size = 0x8, scoped, tag = 'scoped memory for tpu_custom_call.1']
    %14 = vsyncpa [#allocation4], 0
    %s15 = scalar_lea.sflag [#allocation4], 1
    %16 = vsyncpa %s15, 0
    loop: start=0, step=1, limit=4
    $region2: #{tpu_custom_call.1} parent=1 // loop_pre_header
      _
    $region3: #{tpu_custom_call.1} parent=1 // loop_header
      %s18 = sphi 0, %s22
      %p19 = scmp.ge.s32.totalorder %s18, 4
      %s28 = sphi 0, %s30
      %s31 = sphi 0, %s28
      %s32 = sphi 0, %s31
      %s48 = sphi 0, %s32
      %s52 = sphi 0, %s52
      %s54 = sphi 0, %s52
      %s55 = sphi 0, %s54
      %s69 = sphi 0, %s55
      %s73 = sphi 0, %s73
      %s75 = sphi 0, %s73
      %s76 = sphi 0, %s75
      %s90 = sphi 0, %s76
      %s94 = sphi 0, %s94
      %s96 = sphi 0, %s94
      %s97 = sphi 0, %s96
      %s111 = sphi 0, %s97
      %s115 = sphi 0, %s115
      %s117 = sphi 0, %s115
      %s118 = sphi 0, %s117
      %s132 = sphi 0, %s118
      %s136 = sphi 0, %s136
      %s138 = sphi 0, %s136
      %s139 = sphi 0, %s138
      %s153 = sphi 0, %s139
      %s157 = sphi 0, %s157
      %s159 = sphi 0, %s157
      %s160 = sphi 0, %s159
      %s174 = sphi 0, %s160
      %s178 = sphi 0, %s178
      %s180 = sphi 0, %s178
      %s181 = sphi 0, %s180
      %s195 = sphi 0, %s181
      %s199 = sphi 0, %s199
      %s201 = sphi 0, %s199
      %s202 = sphi 0, %s201
      %s216 = sphi 0, %s202
      %s222 = sphi 0, %s224
      %s225 = sphi 0, %s222
      %s226 = sphi 0, %s225
      %s242 = sphi 0, %s226
    $region4: #{tpu_custom_call.1} parent=1 // loop_header_branch
      %21 = sbr.rel (%p19) target = $region8
    $region5: #{tpu_custom_call.1} parent=1 // loop_body
      %s23 = ssub.s32 %s18, 1
      %s24 = ssub.s32 %s18, 2
      %s25 = sadd.s32 %s18, 1
      %s26 = ssub.s32 %s18, %s25
      %p27 = scmp.eq.s32.totalorder %s26, 0
      %s29 = sadd.s32 %s28, 1
      %s30 = scalar_select %p27, %s28, %s29
      %p33 = pneg %p27
      %p34 = scmp.eq.s32.totalorder %s18, 1
      %p35 = por %p33, %p34
      %p36 = scmp.ne.s32.totalorder %s28, %s31
      %p37 = scmp.eq.s32.totalorder %s18, 0
      %p38 = por %p36, %p37
      %p39 = scmp.ne.s32.totalorder %s28, %s31
      %p40 = scmp.eq.s32.totalorder %s23, 1
      %p41 = por %p39, %p40
      %p42 = scmp.ne.s32.totalorder %s31, %s32
      %p43 = scmp.eq.s32.totalorder %s23, 0
      %p44 = por %p42, %p43
      %p45 = scmp.ne.s32.totalorder %s31, %s32
      %p46 = scmp.eq.s32.totalorder %s24, 1
      %p47 = por %p45, %p46
      %p49 = scmp.ne.s32.totalorder %s32, %s48
      %p50 = scmp.eq.s32.totalorder %s24, 0
      %p51 = por %p49, %p50
      %s53 = sadd.s32 %s52, 1
      %p56 = scmp.eq.s32.totalorder %s18, 1
      %p57 = scmp.ne.s32.totalorder %s52, %s54
      %p58 = scmp.eq.s32.totalorder %s18, 0
      %p59 = por %p57, %p58
      %p60 = scmp.ne.s32.totalorder %s52, %s54
      %p61 = scmp.eq.s32.totalorder %s23, 1
      %p62 = por %p60, %p61
      %p63 = scmp.ne.s32.totalorder %s54, %s55
      %p64 = scmp.eq.s32.totalorder %s23, 0
      %p65 = por %p63, %p64
      %p66 = scmp.ne.s32.totalorder %s54, %s55
      %p67 = scmp.eq.s32.totalorder %s24, 1
      %p68 = por %p66, %p67
      %p70 = scmp.ne.s32.totalorder %s55, %s69
      %p71 = scmp.eq.s32.totalorder %s24, 0
      %p72 = por %p70, %p71
      %s74 = sadd.s32 %s73, 1
      %p77 = scmp.eq.s32.totalorder %s18, 1
      %p78 = scmp.ne.s32.totalorder %s73, %s75
      %p79 = scmp.eq.s32.totalorder %s18, 0
      %p80 = por %p78, %p79
      %p81 = scmp.ne.s32.totalorder %s73, %s75
      %p82 = scmp.eq.s32.totalorder %s23, 1
      %p83 = por %p81, %p82
      %p84 = scmp.ne.s32.totalorder %s75, %s76
      %p85 = scmp.eq.s32.totalorder %s23, 0
      %p86 = por %p84, %p85
      %p87 = scmp.ne.s32.totalorder %s75, %s76
      %p88 = scmp.eq.s32.totalorder %s24, 1
      %p89 = por %p87, %p88
      %p91 = scmp.ne.s32.totalorder %s76, %s90
      %p92 = scmp.eq.s32.totalorder %s24, 0
      %p93 = por %p91, %p92
      %s95 = sadd.s32 %s94, 1
      %p98 = scmp.eq.s32.totalorder %s18, 1
      %p99 = scmp.ne.s32.totalorder %s94, %s96
      %p100 = scmp.eq.s32.totalorder %s18, 0
      %p101 = por %p99, %p100
      %p102 = scmp.ne.s32.totalorder %s94, %s96
      %p103 = scmp.eq.s32.totalorder %s23, 1
      %p104 = por %p102, %p103
      %p105 = scmp.ne.s32.totalorder %s96, %s97
      %p106 = scmp.eq.s32.totalorder %s23, 0
      %p107 = por %p105, %p106
      %p108 = scmp.ne.s32.totalorder %s96, %s97
      %p109 = scmp.eq.s32.totalorder %s24, 1
      %p110 = por %p108, %p109
      %p112 = scmp.ne.s32.totalorder %s97, %s111
      %p113 = scmp.eq.s32.totalorder %s24, 0
      %p114 = por %p112, %p113
      %s116 = sadd.s32 %s115, 1
      %p119 = scmp.eq.s32.totalorder %s18, 1
      %p120 = scmp.ne.s32.totalorder %s115, %s117
      %p121 = scmp.eq.s32.totalorder %s18, 0
      %p122 = por %p120, %p121
      %p123 = scmp.ne.s32.totalorder %s115, %s117
      %p124 = scmp.eq.s32.totalorder %s23, 1
      %p125 = por %p123, %p124
      %p126 = scmp.ne.s32.totalorder %s117, %s118
      %p127 = scmp.eq.s32.totalorder %s23, 0
      %p128 = por %p126, %p127
      %p129 = scmp.ne.s32.totalorder %s117, %s118
      %p130 = scmp.eq.s32.totalorder %s24, 1
      %p131 = por %p129, %p130
      %p133 = scmp.ne.s32.totalorder %s118, %s132
      %p134 = scmp.eq.s32.totalorder %s24, 0
      %p135 = por %p133, %p134
      %s137 = sadd.s32 %s136, 1
      %p140 = scmp.eq.s32.totalorder %s18, 1
      %p141 = scmp.ne.s32.totalorder %s136, %s138
      %p142 = scmp.eq.s32.totalorder %s18, 0
      %p143 = por %p141, %p142
      %p144 = scmp.ne.s32.totalorder %s136, %s138
      %p145 = scmp.eq.s32.totalorder %s23, 1
      %p146 = por %p144, %p145
      %p147 = scmp.ne.s32.totalorder %s138, %s139
      %p148 = scmp.eq.s32.totalorder %s23, 0
      %p149 = por %p147, %p148
      %p150 = scmp.ne.s32.totalorder %s138, %s139
      %p151 = scmp.eq.s32.totalorder %s24, 1
      %p152 = por %p150, %p151
      %p154 = scmp.ne.s32.totalorder %s139, %s153
      %p155 = scmp.eq.s32.totalorder %s24, 0
      %p156 = por %p154, %p155
      %s158 = sadd.s32 %s157, 1
      %p161 = scmp.eq.s32.totalorder %s18, 1
      %p162 = scmp.ne.s32.totalorder %s157, %s159
      %p163 = scmp.eq.s32.totalorder %s18, 0
      %p164 = por %p162, %p163
      %p165 = scmp.ne.s32.totalorder %s157, %s159
      %p166 = scmp.eq.s32.totalorder %s23, 1
      %p167 = por %p165, %p166
      %p168 = scmp.ne.s32.totalorder %s159, %s160
      %p169 = scmp.eq.s32.totalorder %s23, 0
      %p170 = por %p168, %p169
      %p171 = scmp.ne.s32.totalorder %s159, %s160
      %p172 = scmp.eq.s32.totalorder %s24, 1
      %p173 = por %p171, %p172
      %p175 = scmp.ne.s32.totalorder %s160, %s174
      %p176 = scmp.eq.s32.totalorder %s24, 0
      %p177 = por %p175, %p176
      %s179 = sadd.s32 %s178, 1
      %p182 = scmp.eq.s32.totalorder %s18, 1
      %p183 = scmp.ne.s32.totalorder %s178, %s180
      %p184 = scmp.eq.s32.totalorder %s18, 0
      %p185 = por %p183, %p184
      %p186 = scmp.ne.s32.totalorder %s178, %s180
      %p187 = scmp.eq.s32.totalorder %s23, 1
      %p188 = por %p186, %p187
      %p189 = scmp.ne.s32.totalorder %s180, %s181
      %p190 = scmp.eq.s32.totalorder %s23, 0
      %p191 = por %p189, %p190
      %p192 = scmp.ne.s32.totalorder %s180, %s181
      %p193 = scmp.eq.s32.totalorder %s24, 1
      %p194 = por %p192, %p193
      %p196 = scmp.ne.s32.totalorder %s181, %s195
      %p197 = scmp.eq.s32.totalorder %s24, 0
      %p198 = por %p196, %p197
      %s200 = sadd.s32 %s199, 1
      %p203 = scmp.eq.s32.totalorder %s18, 1
      %p204 = scmp.ne.s32.totalorder %s199, %s201
      %p205 = scmp.eq.s32.totalorder %s18, 0
      %p206 = por %p204, %p205
      %p207 = scmp.ne.s32.totalorder %s199, %s201
      %p208 = scmp.eq.s32.totalorder %s23, 1
      %p209 = por %p207, %p208
      %p210 = scmp.ne.s32.totalorder %s201, %s202
      %p211 = scmp.eq.s32.totalorder %s23, 0
      %p212 = por %p210, %p211
      %p213 = scmp.ne.s32.totalorder %s201, %s202
      %p214 = scmp.eq.s32.totalorder %s24, 1
      %p215 = por %p213, %p214
      %p217 = scmp.ne.s32.totalorder %s202, %s216
      %p218 = scmp.eq.s32.totalorder %s24, 0
      %p219 = por %p217, %p218
      %s220 = ssub.s32 %s18, %s25
      %p221 = scmp.eq.s32.totalorder %s220, 0
      %s223 = sadd.s32 %s222, 1
      %s224 = scalar_select %p221, %s222, %s223
      %p227 = pneg %p221
      %p228 = scmp.eq.s32.totalorder %s18, 1
      %p229 = por %p227, %p228
      %p230 = scmp.ne.s32.totalorder %s222, %s225
      %p231 = scmp.eq.s32.totalorder %s18, 0
      %p232 = por %p230, %p231
      %p233 = scmp.ne.s32.totalorder %s222, %s225
      %p234 = scmp.eq.s32.totalorder %s23, 1
      %p235 = por %p233, %p234
      %p236 = scmp.ne.s32.totalorder %s225, %s226
      %p237 = scmp.eq.s32.totalorder %s23, 0
      %p238 = por %p236, %p237
      %p239 = scmp.ne.s32.totalorder %s225, %s226
      %p240 = scmp.eq.s32.totalorder %s24, 1
      %p241 = por %p239, %p240
      %p243 = scmp.ne.s32.totalorder %s226, %s242
      %p244 = scmp.eq.s32.totalorder %s24, 0
      %p245 = por %p243, %p244
      %p246 = scmp.le.s32.totalorder 1, %s18
      %p247 = scmp.lt.s32.totalorder %s18, 3
      %p248 = pnand %p246, %p247
      %p249 = pneg %p248
      // Predicated region
      $region9: #{tpu_custom_call.1} parent=5 // pred_check
        _
      $region10: #{tpu_custom_call.1} parent=5 // pred_check_branch
        %251 = sbr.rel (%p248) target = $region12
      $region11: #{tpu_custom_call.1} parent=5 // pred_region
        %s252 = ssub.s32 %s18, 1
        // Predicated region
        $region13: #{tpu_custom_call.1} parent=11 // pred_check
          %p253 = pneg %p65
        $region14: #{tpu_custom_call.1} parent=11 // pred_check_branch
          %255 = sbr.rel (%p253) target = $region16
        $region15: #{tpu_custom_call.1} parent=11 // pred_region
          _
        $region16: #{tpu_custom_call.1} parent=11 // pred_fallthru
          _
        // Predicated region
        $region17: #{tpu_custom_call.1} parent=11 // pred_check
          %p256 = pneg %p86
        $region18: #{tpu_custom_call.1} parent=11 // pred_check_branch
          %258 = sbr.rel (%p256) target = $region20
        $region19: #{tpu_custom_call.1} parent=11 // pred_region
          _
        $region20: #{tpu_custom_call.1} parent=11 // pred_fallthru
          _
        // Predicated region
        $region21: #{tpu_custom_call.1} parent=11 // pred_check
          %p259 = pneg %p107
        $region22: #{tpu_custom_call.1} parent=11 // pred_check_branch
          %261 = sbr.rel (%p259) target = $region24
        $region23: #{tpu_custom_call.1} parent=11 // pred_region
          _
        $region24: #{tpu_custom_call.1} parent=11 // pred_fallthru
          _
        // Predicated region
        $region25: #{tpu_custom_call.1} parent=11 // pred_check
          %p262 = pneg %p128
        $region26: #{tpu_custom_call.1} parent=11 // pred_check_branch
          %264 = sbr.rel (%p262) target = $region28
        $region27: #{tpu_custom_call.1} parent=11 // pred_region
          _
        $region28: #{tpu_custom_call.1} parent=11 // pred_fallthru
          _
        // Predicated region
        $region29: #{tpu_custom_call.1} parent=11 // pred_check
          %p265 = pneg %p149
        $region30: #{tpu_custom_call.1} parent=11 // pred_check_branch
          %267 = sbr.rel (%p265) target = $region32
        $region31: #{tpu_custom_call.1} parent=11 // pred_region
          _
        $region32: #{tpu_custom_call.1} parent=11 // pred_fallthru
          _
        // Predicated region
        $region33: #{tpu_custom_call.1} parent=11 // pred_check
          %p268 = pneg %p170
        $region34: #{tpu_custom_call.1} parent=11 // pred_check_branch
          %270 = sbr.rel (%p268) target = $region36
        $region35: #{tpu_custom_call.1} parent=11 // pred_region
          _
        $region36: #{tpu_custom_call.1} parent=11 // pred_fallthru
          _
        // Predicated region
        $region37: #{tpu_custom_call.1} parent=11 // pred_check
          %p271 = pneg %p191
        $region38: #{tpu_custom_call.1} parent=11 // pred_check_branch
          %273 = sbr.rel (%p271) target = $region40
        $region39: #{tpu_custom_call.1} parent=11 // pred_region
          _
        $region40: #{tpu_custom_call.1} parent=11 // pred_fallthru
          _
        // Predicated region
        $region41: #{tpu_custom_call.1} parent=11 // pred_check
          %p274 = pneg %p212
        $region42: #{tpu_custom_call.1} parent=11 // pred_check_branch
          %276 = sbr.rel (%p274) target = $region44
        $region43: #{tpu_custom_call.1} parent=11 // pred_region
          _
        $region44: #{tpu_custom_call.1} parent=11 // pred_fallthru
          _
      $region12: #{tpu_custom_call.1} parent=5 // pred_fallthru
        _
      %p277 = scmp.lt.s32.totalorder %s18, 2
      // Predicated region
      $region45: #{tpu_custom_call.1} parent=5 // pred_check
        %p278 = pneg %p277
      $region46: #{tpu_custom_call.1} parent=5 // pred_check_branch
        %280 = sbr.rel (%p278) target = $region48
      $region47: #{tpu_custom_call.1} parent=5 // pred_region
        // Predicated region
        $region49: #{tpu_custom_call.1} parent=47 // pred_check
          %p281 = pneg %p38
        $region50: #{tpu_custom_call.1} parent=47 // pred_check_branch
          %283 = sbr.rel (%p281) target = $region52
        $region51: #{tpu_custom_call.1} parent=47 // pred_region
          %p284 = scmp.lt.s32.totalorder %s18, 1
          %s285 = scalar_select %p284, %s18, 1
          %s286 = smul.addr %s285, 8
          %s287 = scalar_lea.vmem %s0, %s286
        $region52: #{tpu_custom_call.1} parent=47 // pred_fallthru
          _
      $region48: #{tpu_custom_call.1} parent=5 // pred_fallthru
        _
      %p288 = scmp.le.s32.totalorder 1, %s18
      %p289 = scmp.lt.s32.totalorder %s18, 3
      %p290 = pnand %p288, %p289
      %p291 = pneg %p290
      // Predicated region
      $region53: #{tpu_custom_call.1} parent=5 // pred_check
        _
      $region54: #{tpu_custom_call.1} parent=5 // pred_check_branch
        %293 = sbr.rel (%p290) target = $region56
      $region55: #{tpu_custom_call.1} parent=5 // pred_region
        %s294 = ssub.s32 %s18, 1
        %p295 = scmp.lt.s32.totalorder %s23, 1
        %s296 = scalar_select %p295, %s23, 1
        %s297 = smul.addr %s296, 8
        %s298 = scalar_lea.vmem %s0, %s297
        %p299 = pneg %p44
        %p300 = pneg %p41
        %p301 = pneg %p65
        %p302 = pneg %p62
        %p303 = pneg %p86
        %p304 = pneg %p83
        %p305 = pneg %p107
        %p306 = pneg %p104
        %p307 = pneg %p128
        %p308 = pneg %p125
        %p309 = pneg %p149
        %p310 = pneg %p146
        %p311 = pneg %p170
        %p312 = pneg %p167
        %p313 = pneg %p191
        %p314 = pneg %p188
        %p315 = pneg %p212
        %p316 = pneg %p209
        %p317 = pneg %p238
        %p318 = pneg %p235
        %s319 = sand.u32 %s225, 1
        %s320 = scalar_lea.sflag [#allocation4], %s319
        %s321 = sand.u32 %s225, 1
        %s322 = smul.addr %s321, 8
        %s323 = scalar_lea.vmem [#allocation3], %s322
        %p324 = scmp.lt.s32.totalorder %s23, 1
        %s325 = scalar_select %p324, %s23, 1
        %s326 = smul.addr %s325, 8
        %s327 = scalar_lea.vmem %s0, %s326
        %v328 = vld [vmem:[%s327] sm:$0xff]
        %v329 = vld [vmem:[%s1] sm:$0xff]
        %v330 = vld [vmem:[%s1 + $0x8] sm:$0xff]
        %v331 = vld [vmem:[%s1 + $0x10] sm:$0xff]
        %v332 = vld [vmem:[%s1 + $0x18] sm:$0xff]
        %vm333 = vcmask 261120
        %v335 = vsel %vm333, %v328, 0
        %337 = vmatprep.subr.mxu0 0.0
        %338 = vmatpush1.msra.mxu0 0.0
        %339 = vmatprep.subr.mxu0 0.0
        %340 = vmatpush1.msra.mxu0 0.0
        %341 = vmatprep.subr.mxu0 0.0
        %342 = vmatpush1.msra.mxu0 0.0
        %343 = vmatprep.subr.mxu0 0.0
        %344 = vmatpush1.msra.mxu0 0.0
        %345 = vmatprep.subr.mxu0 0.0
        %346 = vmatpush1.msra.mxu0 0.0
        %347 = vmatprep.subr.mxu0 0.0
        %348 = vmatpush1.msra.mxu0 0.0
        %349 = vmatprep.subr.mxu0 0.0
        %350 = vmatpush1.msra.mxu0 0.0
        %351 = vmatprep.subr.mxu0 0.0
        %352 = vmatpush1.msra.mxu0 0.0
        %353 = vmatprep.subr.mxu0 0.0
        %354 = vmatpush1.msra.mxu0 0.0
        %355 = vmatprep.subr.mxu0 0.0
        %356 = vmatpush1.msra.mxu0 0.0
        %357 = vmatprep.subr.mxu0 0.0
        %358 = vmatpush1.msra.mxu0 0.0
        %359 = vmatprep.subr.mxu0 0.0
        %360 = vmatpush1.msra.mxu0 0.0
        %361 = vmatprep.subr.mxu0 0.0
        %362 = vmatpush1.msra.mxu0 %v332
        %363 = vmatprep.subr.mxu0 0.0
        %364 = vmatpush1.msra.mxu0 %v331
        %365 = vmatprep.subr.mxu0 0.0
        %366 = vmatpush1.msra.mxu0 %v330
        %367 = vmatprep.subr.mxu0 0.0
        %368 = vmatpush1.msra.mxu0 %v329
        %369 = vmatprep.subr.mxu0 0.0
        %370 = vmatpush2.msra.mxu0 0.0
        %371 = vmatprep.subr.mxu0 0.0
        %372 = vmatpush2.msra.mxu0 0.0
        %373 = vmatprep.subr.mxu0 0.0
        %374 = vmatpush2.msra.mxu0 0.0
        %375 = vmatprep.subr.mxu0 0.0
        %376 = vmatpush2.msra.mxu0 0.0
        %377 = vmatprep.subr.mxu0 0.0
        %378 = vmatpush2.msra.mxu0 0.0
        %379 = vmatprep.subr.mxu0 0.0
        %380 = vmatpush2.msra.mxu0 0.0
        %381 = vmatprep.subr.mxu0 0.0
        %382 = vmatpush2.msra.mxu0 0.0
        %383 = vmatprep.subr.mxu0 0.0
        %384 = vmatpush2.msra.mxu0 0.0
        %385 = vmatprep.subr.mxu0 0.0
        %386 = vmatpush2.msra.mxu0 0.0
        %387 = vmatprep.subr.mxu0 0.0
        %388 = vmatpush2.msra.mxu0 0.0
        %389 = vmatprep.subr.mxu0 0.0
        %390 = vmatpush2.msra.mxu0 0.0
        %391 = vmatprep.subr.mxu0 0.0
        %392 = vmatpush2.msra.mxu0 0.0
        %393 = vmatprep.subr.mxu0 0.0
        %394 = vmatpush2.msra.mxu0 0.0
        %395 = vmatprep.subr.mxu0 0.0
        %396 = vmatpush2.msra.mxu0 0.0
        %397 = vmatprep.subr.mxu0 0.0
        %398 = vmatpush2.msra.mxu0 0.0
        %399 = vmatprep.subr.mxu0 0.0
        %400 = vmatpush2.msra.mxu0 0.0
        %401 = vmatprep.mubr.f32.mxu0 0.0
        %402 = vmatmul.mubr.f32.gmra.mxu0 %v335
        %v403 = vpop.f32.mrf.mxu0
        %v404 = vadd.f32 0.0, %v403
        %v405 = vpop.f32.mrf.mxu0
        %406 = vdwg.mxu0
        %v407 = vld [vmem:[%s2] sm:$0xff]
        %v408 = vld [vmem:[%s2 + $0x8] sm:$0xff]
        %v409 = vld [vmem:[%s2 + $0x10] sm:$0xff]
        %v410 = vld [vmem:[%s2 + $0x18] sm:$0xff]
        %411 = vmatprep.subr.mxu0 0.0
        %412 = vmatpush1.msra.mxu0 0.0
        %413 = vmatprep.subr.mxu0 0.0
        %414 = vmatpush1.msra.mxu0 0.0
        %415 = vmatprep.subr.mxu0 0.0
        %416 = vmatpush1.msra.mxu0 0.0
        %417 = vmatprep.subr.mxu0 0.0
        %418 = vmatpush1.msra.mxu0 0.0
        %419 = vmatprep.subr.mxu0 0.0
        %420 = vmatpush1.msra.mxu0 0.0
        %421 = vmatprep.subr.mxu0 0.0
        %422 = vmatpush1.msra.mxu0 0.0
        %423 = vmatprep.subr.mxu0 0.0
        %424 = vmatpush1.msra.mxu0 0.0
        %425 = vmatprep.subr.mxu0 0.0
        %426 = vmatpush1.msra.mxu0 0.0
        %427 = vmatprep.subr.mxu0 0.0
        %428 = vmatpush1.msra.mxu0 0.0
        %429 = vmatprep.subr.mxu0 0.0
        %430 = vmatpush1.msra.mxu0 0.0
        %431 = vmatprep.subr.mxu0 0.0
        %432 = vmatpush1.msra.mxu0 0.0
        %433 = vmatprep.subr.mxu0 0.0
        %434 = vmatpush1.msra.mxu0 0.0
        %435 = vmatprep.subr.mxu0 0.0
        %436 = vmatpush1.msra.mxu0 %v410
        %437 = vmatprep.subr.mxu0 0.0
        %438 = vmatpush1.msra.mxu0 %v409
        %439 = vmatprep.subr.mxu0 0.0
        %440 = vmatpush1.msra.mxu0 %v408
        %441 = vmatprep.subr.mxu0 0.0
        %442 = vmatpush1.msra.mxu0 %v407
        %443 = vmatprep.subr.mxu0 0.0
        %444 = vmatpush2.msra.mxu0 0.0
        %445 = vmatprep.subr.mxu0 0.0
        %446 = vmatpush2.msra.mxu0 0.0
        %447 = vmatprep.subr.mxu0 0.0
        %448 = vmatpush2.msra.mxu0 0.0
        %449 = vmatprep.subr.mxu0 0.0
        %450 = vmatpush2.msra.mxu0 0.0
        %451 = vmatprep.subr.mxu0 0.0
        %452 = vmatpush2.msra.mxu0 0.0
        %453 = vmatprep.subr.mxu0 0.0
        %454 = vmatpush2.msra.mxu0 0.0
        %455 = vmatprep.subr.mxu0 0.0
        %456 = vmatpush2.msra.mxu0 0.0
        %457 = vmatprep.subr.mxu0 0.0
        %458 = vmatpush2.msra.mxu0 0.0
        %459 = vmatprep.subr.mxu0 0.0
        %460 = vmatpush2.msra.mxu0 0.0
        %461 = vmatprep.subr.mxu0 0.0
        %462 = vmatpush2.msra.mxu0 0.0
        %463 = vmatprep.subr.mxu0 0.0
        %464 = vmatpush2.msra.mxu0 0.0
        %465 = vmatprep.subr.mxu0 0.0
        %466 = vmatpush2.msra.mxu0 0.0
        %467 = vmatprep.subr.mxu0 0.0
        %468 = vmatpush2.msra.mxu0 0.0
        %469 = vmatprep.subr.mxu0 0.0
        %470 = vmatpush2.msra.mxu0 0.0
        %471 = vmatprep.subr.mxu0 0.0
        %472 = vmatpush2.msra.mxu0 0.0
        %473 = vmatprep.subr.mxu0 0.0
        %474 = vmatpush2.msra.mxu0 0.0
        %475 = vmatprep.mubr.f32.mxu0 0.0
        %476 = vmatmul.mubr.f32.gmra.mxu0 %v335
        %v477 = vpop.f32.mrf.mxu0
        %v478 = vadd.f32 0.0, %v477
        %v479 = vpop.f32.mrf.mxu0
        %480 = vdwg.mxu0
        %v481 = vld [vmem:[%s3] sm:$0xff]
        %v482 = vld [vmem:[%s3 + $0x8] sm:$0xff]
        %v483 = vld [vmem:[%s3 + $0x10] sm:$0xff]
        %v484 = vld [vmem:[%s3 + $0x18] sm:$0xff]
        %485 = vmatprep.subr.mxu0 0.0
        %486 = vmatpush1.msra.mxu0 0.0
        %487 = vmatprep.subr.mxu0 0.0
        %488 = vmatpush1.msra.mxu0 0.0
        %489 = vmatprep.subr.mxu0 0.0
        %490 = vmatpush1.msra.mxu0 0.0
        %491 = vmatprep.subr.mxu0 0.0
        %492 = vmatpush1.msra.mxu0 0.0
        %493 = vmatprep.subr.mxu0 0.0
        %494 = vmatpush1.msra.mxu0 0.0
        %495 = vmatprep.subr.mxu0 0.0
        %496 = vmatpush1.msra.mxu0 0.0
        %497 = vmatprep.subr.mxu0 0.0
        %498 = vmatpush1.msra.mxu0 0.0
        %499 = vmatprep.subr.mxu0 0.0
        %500 = vmatpush1.msra.mxu0 0.0
        %501 = vmatprep.subr.mxu0 0.0
        %502 = vmatpush1.msra.mxu0 0.0
        %503 = vmatprep.subr.mxu0 0.0
        %504 = vmatpush1.msra.mxu0 0.0
        %505 = vmatprep.subr.mxu0 0.0
        %506 = vmatpush1.msra.mxu0 0.0
        %507 = vmatprep.subr.mxu0 0.0
        %508 = vmatpush1.msra.mxu0 0.0
        %509 = vmatprep.subr.mxu0 0.0
        %510 = vmatpush1.msra.mxu0 %v484
        %511 = vmatprep.subr.mxu0 0.0
        %512 = vmatpush1.msra.mxu0 %v483
        %513 = vmatprep.subr.mxu0 0.0
        %514 = vmatpush1.msra.mxu0 %v482
        %515 = vmatprep.subr.mxu0 0.0
        %516 = vmatpush1.msra.mxu0 %v481
        %517 = vmatprep.subr.mxu0 0.0
        %518 = vmatpush2.msra.mxu0 0.0
        %519 = vmatprep.subr.mxu0 0.0
        %520 = vmatpush2.msra.mxu0 0.0
        %521 = vmatprep.subr.mxu0 0.0
        %522 = vmatpush2.msra.mxu0 0.0
        %523 = vmatprep.subr.mxu0 0.0
        %524 = vmatpush2.msra.mxu0 0.0
        %525 = vmatprep.subr.mxu0 0.0
        %526 = vmatpush2.msra.mxu0 0.0
        %527 = vmatprep.subr.mxu0 0.0
        %528 = vmatpush2.msra.mxu0 0.0
        %529 = vmatprep.subr.mxu0 0.0
        %530 = vmatpush2.msra.mxu0 0.0
        %531 = vmatprep.subr.mxu0 0.0
        %532 = vmatpush2.msra.mxu0 0.0
        %533 = vmatprep.subr.mxu0 0.0
        %534 = vmatpush2.msra.mxu0 0.0
        %535 = vmatprep.subr.mxu0 0.0
        %536 = vmatpush2.msra.mxu0 0.0
        %537 = vmatprep.subr.mxu0 0.0
        %538 = vmatpush2.msra.mxu0 0.0
        %539 = vmatprep.subr.mxu0 0.0
        %540 = vmatpush2.msra.mxu0 0.0
        %541 = vmatprep.subr.mxu0 0.0
        %542 = vmatpush2.msra.mxu0 0.0
        %543 = vmatprep.subr.mxu0 0.0
        %544 = vmatpush2.msra.mxu0 0.0
        %545 = vmatprep.subr.mxu0 0.0
        %546 = vmatpush2.msra.mxu0 0.0
        %547 = vmatprep.subr.mxu0 0.0
        %548 = vmatpush2.msra.mxu0 0.0
        %549 = vmatprep.mubr.f32.mxu0 0.0
        %550 = vmatmul.mubr.f32.gmra.mxu0 %v335
        %v551 = vpop.f32.mrf.mxu0
        %v552 = vadd.f32 0.0, %v551
        %v553 = vpop.f32.mrf.mxu0
        %554 = vdwg.mxu0
        %v555 = vlaneseq
        %v556 = vshrl.u32 %v555, 7
        %v557 = vlaneseq
        %v558 = vand.u32 %v557, 127
        %vm559 = vcmp.gt.s32.totalorder %v558, %v556
        %v560 = vld [vmem:[%s7] sm:$0xf]
        %v562 = vsel %vm333, %v404, 0
        %v565 = vsel %vm333, %v478, 0
        %567 = vmatprep.subr.mxu0 0.0
        %568 = vmatpush1.xpose.msra.mxu0 0.0
        %569 = vmatprep.subr.mxu0 0.0
        %570 = vmatpush1.xpose.msra.mxu0 0.0
        %571 = vmatprep.subr.mxu0 0.0
        %572 = vmatpush1.xpose.msra.mxu0 0.0
        %573 = vmatprep.subr.mxu0 0.0
        %574 = vmatpush1.xpose.msra.mxu0 0.0
        %575 = vmatprep.subr.mxu0 0.0
        %576 = vmatpush1.xpose.msra.mxu0 0.0
        %577 = vmatprep.subr.mxu0 0.0
        %578 = vmatpush1.xpose.msra.mxu0 0.0
        %579 = vmatprep.subr.mxu0 0.0
        %580 = vmatpush1.xpose.msra.mxu0 0.0
        %581 = vmatprep.subr.mxu0 0.0
        %582 = vmatpush1.xpose.msra.mxu0 0.0
        %583 = vmatprep.subr.mxu0 0.0
        %584 = vmatpush1.xpose.msra.mxu0 0.0
        %585 = vmatprep.subr.mxu0 0.0
        %586 = vmatpush1.xpose.msra.mxu0 0.0
        %587 = vmatprep.subr.mxu0 0.0
        %588 = vmatpush1.xpose.msra.mxu0 0.0
        %589 = vmatprep.subr.mxu0 0.0
        %590 = vmatpush1.xpose.msra.mxu0 0.0
        %591 = vmatprep.subr.mxu0 0.0
        %592 = vmatpush1.xpose.msra.mxu0 0.0
        %593 = vmatprep.subr.mxu0 0.0
        %594 = vmatpush1.xpose.msra.mxu0 0.0
        %595 = vmatprep.subr.mxu0 0.0
        %596 = vmatpush1.xpose.msra.mxu0 0.0
        %597 = vmatprep.subr.mxu0 0.0
        %598 = vmatpush1.xpose.msra.mxu0 %v565
        %599 = vmatprep.subr.mxu0 0.0
        %600 = vmatpush2.xpose.msra.mxu0 0.0
        %601 = vmatprep.subr.mxu0 0.0
        %602 = vmatpush2.xpose.msra.mxu0 0.0
        %603 = vmatprep.subr.mxu0 0.0
        %604 = vmatpush2.xpose.msra.mxu0 0.0
        %605 = vmatprep.subr.mxu0 0.0
        %606 = vmatpush2.xpose.msra.mxu0 0.0
        %607 = vmatprep.subr.mxu0 0.0
        %608 = vmatpush2.xpose.msra.mxu0 0.0
        %609 = vmatprep.subr.mxu0 0.0
        %610 = vmatpush2.xpose.msra.mxu0 0.0
        %611 = vmatprep.subr.mxu0 0.0
        %612 = vmatpush2.xpose.msra.mxu0 0.0
        %613 = vmatprep.subr.mxu0 0.0
        %614 = vmatpush2.xpose.msra.mxu0 0.0
        %615 = vmatprep.subr.mxu0 0.0
        %616 = vmatpush2.xpose.msra.mxu0 0.0
        %617 = vmatprep.subr.mxu0 0.0
        %618 = vmatpush2.xpose.msra.mxu0 0.0
        %619 = vmatprep.subr.mxu0 0.0
        %620 = vmatpush2.xpose.msra.mxu0 0.0
        %621 = vmatprep.subr.mxu0 0.0
        %622 = vmatpush2.xpose.msra.mxu0 0.0
        %623 = vmatprep.subr.mxu0 0.0
        %624 = vmatpush2.xpose.msra.mxu0 0.0
        %625 = vmatprep.subr.mxu0 0.0
        %626 = vmatpush2.xpose.msra.mxu0 0.0
        %627 = vmatprep.subr.mxu0 0.0
        %628 = vmatpush2.xpose.msra.mxu0 0.0
        %629 = vmatprep.subr.mxu0 0.0
        %630 = vmatpush2.xpose.msra.mxu0 0.0
        %631 = vmatprep.mubr.f32.mxu0 0.0
        %632 = vmatmul.mubr.f32.gmra.mxu0 %v562
        %v633 = vpop.f32.mrf.mxu0
        %v634 = vadd.f32 0.0, %v633
        %v635 = vpop.f32.mrf.mxu0
        %636 = vdwg.mxu0
        %v637 = vsel %vm559, -1e+30, %v634
        %vm638 = vcmask 64512
        %v639 = vsel %vm638, %v637, -inf
        %640 = vmax.xlane.f32.xlu0 %v639
        %v641 = vpop.xlane.xlu0 %640
        %v642 = vsub.f32 %v637, %v641
        %v643 = vmul.f32 %v642, 1.442695
        %v644 = vpow.pop %v643
        %v645 = vsel %vm638, %v644, 0.0
        %646 = vadd.xlane.f32.xlu0 %v645
        %v647 = vpop.xlane.xlu0 %646
        %v648 = vrcp.pop %v647
        %v649 = vmul.f32 %v644, %v648
        %v651 = vsel %vm638, %v649, 0
        %653 = vmatprep.subr.mxu0 0.0
        %654 = vmatpush1.msra.mxu0 0.0
        %655 = vmatprep.subr.mxu0 0.0
        %656 = vmatpush1.msra.mxu0 0.0
        %657 = vmatprep.subr.mxu0 0.0
        %658 = vmatpush1.msra.mxu0 0.0
        %659 = vmatprep.subr.mxu0 0.0
        %660 = vmatpush1.msra.mxu0 0.0
        %661 = vmatprep.subr.mxu0 0.0
        %662 = vmatpush1.msra.mxu0 0.0
        %663 = vmatprep.subr.mxu0 0.0
        %664 = vmatpush1.msra.mxu0 0.0
        %665 = vmatprep.subr.mxu0 0.0
        %666 = vmatpush1.msra.mxu0 0.0
        %667 = vmatprep.subr.mxu0 0.0
        %668 = vmatpush1.msra.mxu0 0.0
        %669 = vmatprep.subr.mxu0 0.0
        %670 = vmatpush1.msra.mxu0 0.0
        %671 = vmatprep.subr.mxu0 0.0
        %672 = vmatpush1.msra.mxu0 0.0
        %673 = vmatprep.subr.mxu0 0.0
        %674 = vmatpush1.msra.mxu0 0.0
        %675 = vmatprep.subr.mxu0 0.0
        %676 = vmatpush1.msra.mxu0 0.0
        %677 = vmatprep.subr.mxu0 0.0
        %678 = vmatpush1.msra.mxu0 0.0
        %679 = vmatprep.subr.mxu0 0.0
        %680 = vmatpush1.msra.mxu0 0.0
        %681 = vmatprep.subr.mxu0 0.0
        %682 = vmatpush1.msra.mxu0 0.0
        %683 = vmatprep.subr.mxu0 0.0
        %684 = vmatpush1.msra.mxu0 %v552
        %685 = vmatprep.subr.mxu0 0.0
        %686 = vmatpush2.msra.mxu0 0.0
        %687 = vmatprep.subr.mxu0 0.0
        %688 = vmatpush2.msra.mxu0 0.0
        %689 = vmatprep.subr.mxu0 0.0
        %690 = vmatpush2.msra.mxu0 0.0
        %691 = vmatprep.subr.mxu0 0.0
        %692 = vmatpush2.msra.mxu0 0.0
        %693 = vmatprep.subr.mxu0 0.0
        %694 = vmatpush2.msra.mxu0 0.0
        %695 = vmatprep.subr.mxu0 0.0
        %696 = vmatpush2.msra.mxu0 0.0
        %697 = vmatprep.subr.mxu0 0.0
        %698 = vmatpush2.msra.mxu0 0.0
        %699 = vmatprep.subr.mxu0 0.0
        %700 = vmatpush2.msra.mxu0 0.0
        %701 = vmatprep.subr.mxu0 0.0
        %702 = vmatpush2.msra.mxu0 0.0
        %703 = vmatprep.subr.mxu0 0.0
        %704 = vmatpush2.msra.mxu0 0.0
        %705 = vmatprep.subr.mxu0 0.0
        %706 = vmatpush2.msra.mxu0 0.0
        %707 = vmatprep.subr.mxu0 0.0
        %708 = vmatpush2.msra.mxu0 0.0
        %709 = vmatprep.subr.mxu0 0.0
        %710 = vmatpush2.msra.mxu0 0.0
        %711 = vmatprep.subr.mxu0 0.0
        %712 = vmatpush2.msra.mxu0 0.0
        %713 = vmatprep.subr.mxu0 0.0
        %714 = vmatpush2.msra.mxu0 0.0
        %715 = vmatprep.subr.mxu0 0.0
        %716 = vmatpush2.msra.mxu0 0.0
        %717 = vmatprep.mubr.f32.mxu0 0.0
        %718 = vmatmul.mubr.f32.gmra.mxu0 %v651
        %v719 = vpop.f32.mrf.mxu0
        %v720 = vadd.f32 0.0, %v719
        %v721 = vpop.f32.mrf.mxu0
        %722 = vdwg.mxu0
        %723 = vst.msk [vmem:[#allocation2] sm:$0xff] %vm333, %v720
        %724 = vrot.lane.b32.xlu0 %v404, 96
        %v725 = vpop.permute.xlu0 %724
        %726 = vrot.lane.b32.xlu0 %v478, 96
        %v727 = vpop.permute.xlu0 %726
        %v728 = vsel %vm333, %v725, 0
        %v730 = vsel %vm333, %v727, 0
        %732 = vmatprep.subr.mxu0 0.0
        %733 = vmatpush1.xpose.msra.mxu0 0.0
        %734 = vmatprep.subr.mxu0 0.0
        %735 = vmatpush1.xpose.msra.mxu0 0.0
        %736 = vmatprep.subr.mxu0 0.0
        %737 = vmatpush1.xpose.msra.mxu0 0.0
        %738 = vmatprep.subr.mxu0 0.0
        %739 = vmatpush1.xpose.msra.mxu0 0.0
        %740 = vmatprep.subr.mxu0 0.0
        %741 = vmatpush1.xpose.msra.mxu0 0.0
        %742 = vmatprep.subr.mxu0 0.0
        %743 = vmatpush1.xpose.msra.mxu0 0.0
        %744 = vmatprep.subr.mxu0 0.0
        %745 = vmatpush1.xpose.msra.mxu0 0.0
        %746 = vmatprep.subr.mxu0 0.0
        %747 = vmatpush1.xpose.msra.mxu0 0.0
        %748 = vmatprep.subr.mxu0 0.0
        %749 = vmatpush1.xpose.msra.mxu0 0.0
        %750 = vmatprep.subr.mxu0 0.0
        %751 = vmatpush1.xpose.msra.mxu0 0.0
        %752 = vmatprep.subr.mxu0 0.0
        %753 = vmatpush1.xpose.msra.mxu0 0.0
        %754 = vmatprep.subr.mxu0 0.0
        %755 = vmatpush1.xpose.msra.mxu0 0.0
        %756 = vmatprep.subr.mxu0 0.0
        %757 = vmatpush1.xpose.msra.mxu0 0.0
        %758 = vmatprep.subr.mxu0 0.0
        %759 = vmatpush1.xpose.msra.mxu0 0.0
        %760 = vmatprep.subr.mxu0 0.0
        %761 = vmatpush1.xpose.msra.mxu0 0.0
        %762 = vmatprep.subr.mxu0 0.0
        %763 = vmatpush1.xpose.msra.mxu0 %v730
        %764 = vmatprep.subr.mxu0 0.0
        %765 = vmatpush2.xpose.msra.mxu0 0.0
        %766 = vmatprep.subr.mxu0 0.0
        %767 = vmatpush2.xpose.msra.mxu0 0.0
        %768 = vmatprep.subr.mxu0 0.0
        %769 = vmatpush2.xpose.msra.mxu0 0.0
        %770 = vmatprep.subr.mxu0 0.0
        %771 = vmatpush2.xpose.msra.mxu0 0.0
        %772 = vmatprep.subr.mxu0 0.0
        %773 = vmatpush2.xpose.msra.mxu0 0.0
        %774 = vmatprep.subr.mxu0 0.0
        %775 = vmatpush2.xpose.msra.mxu0 0.0
        %776 = vmatprep.subr.mxu0 0.0
        %777 = vmatpush2.xpose.msra.mxu0 0.0
        %778 = vmatprep.subr.mxu0 0.0
        %779 = vmatpush2.xpose.msra.mxu0 0.0
        %780 = vmatprep.subr.mxu0 0.0
        %781 = vmatpush2.xpose.msra.mxu0 0.0
        %782 = vmatprep.subr.mxu0 0.0
        %783 = vmatpush2.xpose.msra.mxu0 0.0
        %784 = vmatprep.subr.mxu0 0.0
        %785 = vmatpush2.xpose.msra.mxu0 0.0
        %786 = vmatprep.subr.mxu0 0.0
        %787 = vmatpush2.xpose.msra.mxu0 0.0
        %788 = vmatprep.subr.mxu0 0.0
        %789 = vmatpush2.xpose.msra.mxu0 0.0
        %790 = vmatprep.subr.mxu0 0.0
        %791 = vmatpush2.xpose.msra.mxu0 0.0
        %792 = vmatprep.subr.mxu0 0.0
        %793 = vmatpush2.xpose.msra.mxu0 0.0
        %794 = vmatprep.subr.mxu0 0.0
        %795 = vmatpush2.xpose.msra.mxu0 0.0
        %796 = vmatprep.mubr.f32.mxu0 0.0
        %797 = vmatmul.mubr.f32.gmra.mxu0 %v728
        %v798 = vpop.f32.mrf.mxu0
        %v799 = vadd.f32 0.0, %v798
        %v800 = vpop.f32.mrf.mxu0
        %801 = vdwg.mxu0
        %v802 = vsel %vm559, -1e+30, %v799
        %v803 = vsel %vm638, %v802, -inf
        %804 = vmax.xlane.f32.xlu0 %v803
        %v805 = vpop.xlane.xlu0 %804
        %v806 = vsub.f32 %v802, %v805
        %v807 = vmul.f32 %v806, 1.442695
        %v808 = vpow.pop %v807
        %v809 = vsel %vm638, %v808, 0.0
        %810 = vadd.xlane.f32.xlu0 %v809
        %v811 = vpop.xlane.xlu0 %810
        %v812 = vrcp.pop %v811
        %v813 = vmul.f32 %v808, %v812
        %815 = vrot.lane.b32.xlu0 %v552, 96
        %v816 = vpop.permute.xlu0 %815
        %v819 = vsel %vm638, %v813, 0
        %821 = vmatprep.subr.mxu0 0.0
        %822 = vmatpush1.msra.mxu0 0.0
        %823 = vmatprep.subr.mxu0 0.0
        %824 = vmatpush1.msra.mxu0 0.0
        %825 = vmatprep.subr.mxu0 0.0
        %826 = vmatpush1.msra.mxu0 0.0
        %827 = vmatprep.subr.mxu0 0.0
        %828 = vmatpush1.msra.mxu0 0.0
        %829 = vmatprep.subr.mxu0 0.0
        %830 = vmatpush1.msra.mxu0 0.0
        %831 = vmatprep.subr.mxu0 0.0
        %832 = vmatpush1.msra.mxu0 0.0
        %833 = vmatprep.subr.mxu0 0.0
        %834 = vmatpush1.msra.mxu0 0.0
        %835 = vmatprep.subr.mxu0 0.0
        %836 = vmatpush1.msra.mxu0 0.0
        %837 = vmatprep.subr.mxu0 0.0
        %838 = vmatpush1.msra.mxu0 0.0
        %839 = vmatprep.subr.mxu0 0.0
        %840 = vmatpush1.msra.mxu0 0.0
        %841 = vmatprep.subr.mxu0 0.0
        %842 = vmatpush1.msra.mxu0 0.0
        %843 = vmatprep.subr.mxu0 0.0
        %844 = vmatpush1.msra.mxu0 0.0
        %845 = vmatprep.subr.mxu0 0.0
        %846 = vmatpush1.msra.mxu0 0.0
        %847 = vmatprep.subr.mxu0 0.0
        %848 = vmatpush1.msra.mxu0 0.0
        %849 = vmatprep.subr.mxu0 0.0
        %850 = vmatpush1.msra.mxu0 0.0
        %851 = vmatprep.subr.mxu0 0.0
        %852 = vmatpush1.msra.mxu0 %v816
        %853 = vmatprep.subr.mxu0 0.0
        %854 = vmatpush2.msra.mxu0 0.0
        %855 = vmatprep.subr.mxu0 0.0
        %856 = vmatpush2.msra.mxu0 0.0
        %857 = vmatprep.subr.mxu0 0.0
        %858 = vmatpush2.msra.mxu0 0.0
        %859 = vmatprep.subr.mxu0 0.0
        %860 = vmatpush2.msra.mxu0 0.0
        %861 = vmatprep.subr.mxu0 0.0
        %862 = vmatpush2.msra.mxu0 0.0
        %863 = vmatprep.subr.mxu0 0.0
        %864 = vmatpush2.msra.mxu0 0.0
        %865 = vmatprep.subr.mxu0 0.0
        %866 = vmatpush2.msra.mxu0 0.0
        %867 = vmatprep.subr.mxu0 0.0
        %868 = vmatpush2.msra.mxu0 0.0
        %869 = vmatprep.subr.mxu0 0.0
        %870 = vmatpush2.msra.mxu0 0.0
        %871 = vmatprep.subr.mxu0 0.0
        %872 = vmatpush2.msra.mxu0 0.0
        %873 = vmatprep.subr.mxu0 0.0
        %874 = vmatpush2.msra.mxu0 0.0
        %875 = vmatprep.subr.mxu0 0.0
        %876 = vmatpush2.msra.mxu0 0.0
        %877 = vmatprep.subr.mxu0 0.0
        %878 = vmatpush2.msra.mxu0 0.0
        %879 = vmatprep.subr.mxu0 0.0
        %880 = vmatpush2.msra.mxu0 0.0
        %881 = vmatprep.subr.mxu0 0.0
        %882 = vmatpush2.msra.mxu0 0.0
        %883 = vmatprep.subr.mxu0 0.0
        %884 = vmatpush2.msra.mxu0 0.0
        %885 = vmatprep.mubr.f32.mxu0 0.0
        %886 = vmatmul.mubr.f32.gmra.mxu0 %v819
        %v887 = vpop.f32.mrf.mxu0
        %v888 = vadd.f32 0.0, %v887
        %v889 = vpop.f32.mrf.mxu0
        %890 = vdwg.mxu0
        %892 = vrot.lane.b32.xlu0 %v888, 32
        %v893 = vpop.permute.xlu0 %892
        %vm895 = vcmask 523520
        %896 = vst.msk [vmem:[#allocation2] sm:$0xff] %vm895, %v893
        %v897 = vld [vmem:[#allocation2] sm:$0xff]
        %v898 = vld [vmem:[%s4] sm:$0xff]
        %v899 = vld [vmem:[%s4 + $0x8] sm:$0xff]
        %v900 = vld [vmem:[%s4 + $0x10] sm:$0xff]
        %v901 = vld [vmem:[%s4 + $0x18] sm:$0xff]
        %v902 = vld [vmem:[%s4 + $0x20] sm:$0xff]
        %v903 = vld [vmem:[%s4 + $0x28] sm:$0xff]
        %v904 = vld [vmem:[%s4 + $0x30] sm:$0xff]
        %v905 = vld [vmem:[%s4 + $0x38] sm:$0xff]
        %v906 = vlaneseq
        %v907 = vshrl.u32 %v906, 7
        %v908 = vsub.s32 0, %v907
        %v909 = vrot.slane %v560, %v908
        %vm910 = vcmask 523264
        %v912 = vsel %vm910, %v897, 0
        %914 = vmatprep.subr.mxu0 0.0
        %915 = vmatpush1.msra.mxu0 0.0
        %916 = vmatprep.subr.mxu0 0.0
        %917 = vmatpush1.msra.mxu0 0.0
        %918 = vmatprep.subr.mxu0 0.0
        %919 = vmatpush1.msra.mxu0 0.0
        %920 = vmatprep.subr.mxu0 0.0
        %921 = vmatpush1.msra.mxu0 0.0
        %922 = vmatprep.subr.mxu0 0.0
        %923 = vmatpush1.msra.mxu0 0.0
        %924 = vmatprep.subr.mxu0 0.0
        %925 = vmatpush1.msra.mxu0 0.0
        %926 = vmatprep.subr.mxu0 0.0
        %927 = vmatpush1.msra.mxu0 0.0
        %928 = vmatprep.subr.mxu0 0.0
        %929 = vmatpush1.msra.mxu0 0.0
        %930 = vmatprep.subr.mxu0 0.0
        %931 = vmatpush1.msra.mxu0 %v905
        %932 = vmatprep.subr.mxu0 0.0
        %933 = vmatpush1.msra.mxu0 %v904
        %934 = vmatprep.subr.mxu0 0.0
        %935 = vmatpush1.msra.mxu0 %v903
        %936 = vmatprep.subr.mxu0 0.0
        %937 = vmatpush1.msra.mxu0 %v902
        %938 = vmatprep.subr.mxu0 0.0
        %939 = vmatpush1.msra.mxu0 %v901
        %940 = vmatprep.subr.mxu0 0.0
        %941 = vmatpush1.msra.mxu0 %v900
        %942 = vmatprep.subr.mxu0 0.0
        %943 = vmatpush1.msra.mxu0 %v899
        %944 = vmatprep.subr.mxu0 0.0
        %945 = vmatpush1.msra.mxu0 %v898
        %946 = vmatprep.subr.mxu0 0.0
        %947 = vmatpush2.msra.mxu0 0.0
        %948 = vmatprep.subr.mxu0 0.0
        %949 = vmatpush2.msra.mxu0 0.0
        %950 = vmatprep.subr.mxu0 0.0
        %951 = vmatpush2.msra.mxu0 0.0
        %952 = vmatprep.subr.mxu0 0.0
        %953 = vmatpush2.msra.mxu0 0.0
        %954 = vmatprep.subr.mxu0 0.0
        %955 = vmatpush2.msra.mxu0 0.0
        %956 = vmatprep.subr.mxu0 0.0
        %957 = vmatpush2.msra.mxu0 0.0
        %958 = vmatprep.subr.mxu0 0.0
        %959 = vmatpush2.msra.mxu0 0.0
        %960 = vmatprep.subr.mxu0 0.0
        %961 = vmatpush2.msra.mxu0 0.0
        %962 = vmatprep.subr.mxu0 0.0
        %963 = vmatpush2.msra.mxu0 0.0
        %964 = vmatprep.subr.mxu0 0.0
        %965 = vmatpush2.msra.mxu0 0.0
        %966 = vmatprep.subr.mxu0 0.0
        %967 = vmatpush2.msra.mxu0 0.0
        %968 = vmatprep.subr.mxu0 0.0
        %969 = vmatpush2.msra.mxu0 0.0
        %970 = vmatprep.subr.mxu0 0.0
        %971 = vmatpush2.msra.mxu0 0.0
        %972 = vmatprep.subr.mxu0 0.0
        %973 = vmatpush2.msra.mxu0 0.0
        %974 = vmatprep.subr.mxu0 0.0
        %975 = vmatpush2.msra.mxu0 0.0
        %976 = vmatprep.subr.mxu0 0.0
        %977 = vmatpush2.msra.mxu0 0.0
        %978 = vmatprep.mubr.f32.mxu0 0.0
        %979 = vmatmul.mubr.f32.gmra.mxu0 %v912
        %v980 = vpop.f32.mrf.mxu0
        %v981 = vadd.f32 %v909, %v980
        %v982 = vpop.f32.mrf.mxu0
        %983 = vdwg.mxu0
        %v984 = vadd.f32 %v981, %v328
        %v985 = vsel %vm333, %v984, 0.0
        %986 = vadd.xlane.f32.xlu0 %v985
        %v987 = vpop.xlane.xlu0 %986
        %v988 = vrcp.pop 32.0
        %v989 = vmul.f32 %v987, %v988
        %v990 = vsub.f32 %v984, %v989
        %v991 = vmul.f32 %v990, %v990
        %v992 = vsel %vm333, %v991, 0.0
        %993 = vadd.xlane.f32.xlu0 %v992
        %v994 = vpop.xlane.xlu0 %993
        %v995 = vmul.f32 %v994, %v988
        %v996 = vadd.f32 %v995, 1e-05
        %v997 = vrsqrt.pop %v996
        %v998 = vmul.f32 %v990, %v997
        %v999 = vlaneseq
        %v1000 = vshrl.u32 %v999, 7
        %v1001 = vsub.s32 1, %v1000
        %v1002 = vrot.slane %v560, %v1001
        %v1003 = vmul.f32 %v998, %v1002
        %v1004 = vlaneseq
        %v1005 = vshrl.u32 %v1004, 7
        %v1006 = vsub.s32 2, %v1005
        %v1007 = vrot.slane %v560, %v1006
        %v1008 = vadd.f32 %v1003, %v1007
        %v1009 = vld [vmem:[%s5] sm:$0xff]
        %v1010 = vld [vmem:[%s5 + $0x8] sm:$0xff]
        %v1011 = vld [vmem:[%s5 + $0x10] sm:$0xff]
        %v1012 = vld [vmem:[%s5 + $0x18] sm:$0xff]
        %v1013 = vld [vmem:[%s8] sm:$0x1]
        %v1015 = vlaneseq
        %v1016 = vshrl.u32 %v1015, 7
        %v1017 = vsub.s32 0, %v1016
        %v1018 = vrot.slane %v1013, %v1017
        %v1021 = vsel %vm333, %v1008, 0
        %1023 = vmatprep.subr.mxu0 0.0
        %1024 = vmatpush1.msra.mxu0 0.0
        %1025 = vmatprep.subr.mxu0 0.0
        %1026 = vmatpush1.msra.mxu0 0.0
        %1027 = vmatprep.subr.mxu0 0.0
        %1028 = vmatpush1.msra.mxu0 0.0
        %1029 = vmatprep.subr.mxu0 0.0
        %1030 = vmatpush1.msra.mxu0 0.0
        %1031 = vmatprep.subr.mxu0 0.0
        %1032 = vmatpush1.msra.mxu0 0.0
        %1033 = vmatprep.subr.mxu0 0.0
        %1034 = vmatpush1.msra.mxu0 0.0
        %1035 = vmatprep.subr.mxu0 0.0
        %1036 = vmatpush1.msra.mxu0 0.0
        %1037 = vmatprep.subr.mxu0 0.0
        %1038 = vmatpush1.msra.mxu0 0.0
        %1039 = vmatprep.subr.mxu0 0.0
        %1040 = vmatpush1.msra.mxu0 0.0
        %1041 = vmatprep.subr.mxu0 0.0
        %1042 = vmatpush1.msra.mxu0 0.0
        %1043 = vmatprep.subr.mxu0 0.0
        %1044 = vmatpush1.msra.mxu0 0.0
        %1045 = vmatprep.subr.mxu0 0.0
        %1046 = vmatpush1.msra.mxu0 0.0
        %1047 = vmatprep.subr.mxu0 0.0
        %1048 = vmatpush1.msra.mxu0 %v1012
        %1049 = vmatprep.subr.mxu0 0.0
        %1050 = vmatpush1.msra.mxu0 %v1011
        %1051 = vmatprep.subr.mxu0 0.0
        %1052 = vmatpush1.msra.mxu0 %v1010
        %1053 = vmatprep.subr.mxu0 0.0
        %1054 = vmatpush1.msra.mxu0 %v1009
        %1055 = vmatprep.subr.mxu0 0.0
        %1056 = vmatpush2.msra.mxu0 0.0
        %1057 = vmatprep.subr.mxu0 0.0
        %1058 = vmatpush2.msra.mxu0 0.0
        %1059 = vmatprep.subr.mxu0 0.0
        %1060 = vmatpush2.msra.mxu0 0.0
        %1061 = vmatprep.subr.mxu0 0.0
        %1062 = vmatpush2.msra.mxu0 0.0
        %1063 = vmatprep.subr.mxu0 0.0
        %1064 = vmatpush2.msra.mxu0 0.0
        %1065 = vmatprep.subr.mxu0 0.0
        %1066 = vmatpush2.msra.mxu0 0.0
        %1067 = vmatprep.subr.mxu0 0.0
        %1068 = vmatpush2.msra.mxu0 0.0
        %1069 = vmatprep.subr.mxu0 0.0
        %1070 = vmatpush2.msra.mxu0 0.0
        %1071 = vmatprep.subr.mxu0 0.0
        %1072 = vmatpush2.msra.mxu0 0.0
        %1073 = vmatprep.subr.mxu0 0.0
        %1074 = vmatpush2.msra.mxu0 0.0
        %1075 = vmatprep.subr.mxu0 0.0
        %1076 = vmatpush2.msra.mxu0 0.0
        %1077 = vmatprep.subr.mxu0 0.0
        %1078 = vmatpush2.msra.mxu0 0.0
        %1079 = vmatprep.subr.mxu0 0.0
        %1080 = vmatpush2.msra.mxu0 0.0
        %1081 = vmatprep.subr.mxu0 0.0
        %1082 = vmatpush2.msra.mxu0 0.0
        %1083 = vmatprep.subr.mxu0 0.0
        %1084 = vmatpush2.msra.mxu0 0.0
        %1085 = vmatprep.subr.mxu0 0.0
        %1086 = vmatpush2.msra.mxu0 0.0
        %1087 = vmatprep.mubr.f32.mxu0 0.0
        %1088 = vmatmul.mubr.f32.gmra.mxu0 %v1021
        %v1089 = vpop.f32.mrf.mxu0
        %v1090 = vadd.f32 %v1018, %v1089
        %v1091 = vpop.f32.mrf.mxu0
        %1092 = vdwg.mxu0
        %v1093 = vmax.f32 %v1090, 0.0
        %v1094 = vld [vmem:[%s6] sm:$0xff]
        %v1095 = vld [vmem:[%s6 + $0x8] sm:$0xff]
        %v1096 = vld [vmem:[%s6 + $0x10] sm:$0xff]
        %v1097 = vld [vmem:[%s6 + $0x18] sm:$0xff]
        %v1098 = vld [vmem:[%s6 + $0x20] sm:$0xff]
        %v1099 = vld [vmem:[%s6 + $0x28] sm:$0xff]
        %v1100 = vld [vmem:[%s6 + $0x30] sm:$0xff]
        %v1101 = vld [vmem:[%s6 + $0x38] sm:$0xff]
        %v1102 = vld [vmem:[%s6 + $0x40] sm:$0xff]
        %v1103 = vld [vmem:[%s6 + $0x48] sm:$0xff]
        %v1104 = vld [vmem:[%s6 + $0x50] sm:$0xff]
        %v1105 = vld [vmem:[%s6 + $0x58] sm:$0xff]
        %v1106 = vld [vmem:[%s6 + $0x60] sm:$0xff]
        %v1107 = vld [vmem:[%s6 + $0x68] sm:$0xff]
        %v1108 = vld [vmem:[%s6 + $0x70] sm:$0xff]
        %v1109 = vld [vmem:[%s6 + $0x78] sm:$0xff]
        %v1110 = vlaneseq
        %v1111 = vshrl.u32 %v1110, 7
        %v1112 = vsub.s32 3, %v1111
        %v1113 = vrot.slane %v560, %v1112
        %1114 = vmatprep.subr.mxu0 0.0
        %1115 = vmatpush1.msra.mxu0 %v1109
        %1116 = vmatprep.subr.mxu0 0.0
        %1117 = vmatpush1.msra.mxu0 %v1108
        %1118 = vmatprep.subr.mxu0 0.0
        %1119 = vmatpush1.msra.mxu0 %v1107
        %1120 = vmatprep.subr.mxu0 0.0
        %1121 = vmatpush1.msra.mxu0 %v1106
        %1122 = vmatprep.subr.mxu0 0.0
        %1123 = vmatpush1.msra.mxu0 %v1105
        %1124 = vmatprep.subr.mxu0 0.0
        %1125 = vmatpush1.msra.mxu0 %v1104
        %1126 = vmatprep.subr.mxu0 0.0
        %1127 = vmatpush1.msra.mxu0 %v1103
        %1128 = vmatprep.subr.mxu0 0.0
        %1129 = vmatpush1.msra.mxu0 %v1102
        %1130 = vmatprep.subr.mxu0 0.0
        %1131 = vmatpush1.msra.mxu0 %v1101
        %1132 = vmatprep.subr.mxu0 0.0
        %1133 = vmatpush1.msra.mxu0 %v1100
        %1134 = vmatprep.subr.mxu0 0.0
        %1135 = vmatpush1.msra.mxu0 %v1099
        %1136 = vmatprep.subr.mxu0 0.0
        %1137 = vmatpush1.msra.mxu0 %v1098
        %1138 = vmatprep.subr.mxu0 0.0
        %1139 = vmatpush1.msra.mxu0 %v1097
        %1140 = vmatprep.subr.mxu0 0.0
        %1141 = vmatpush1.msra.mxu0 %v1096
        %1142 = vmatprep.subr.mxu0 0.0
        %1143 = vmatpush1.msra.mxu0 %v1095
        %1144 = vmatprep.subr.mxu0 0.0
        %1145 = vmatpush1.msra.mxu0 %v1094
        %1146 = vmatprep.subr.mxu0 0.0
        %1147 = vmatpush2.msra.mxu0 0.0
        %1148 = vmatprep.subr.mxu0 0.0
        %1149 = vmatpush2.msra.mxu0 0.0
        %1150 = vmatprep.subr.mxu0 0.0
        %1151 = vmatpush2.msra.mxu0 0.0
        %1152 = vmatprep.subr.mxu0 0.0
        %1153 = vmatpush2.msra.mxu0 0.0
        %1154 = vmatprep.subr.mxu0 0.0
        %1155 = vmatpush2.msra.mxu0 0.0
        %1156 = vmatprep.subr.mxu0 0.0
        %1157 = vmatpush2.msra.mxu0 0.0
        %1158 = vmatprep.subr.mxu0 0.0
        %1159 = vmatpush2.msra.mxu0 0.0
        %1160 = vmatprep.subr.mxu0 0.0
        %1161 = vmatpush2.msra.mxu0 0.0
        %1162 = vmatprep.subr.mxu0 0.0
        %1163 = vmatpush2.msra.mxu0 0.0
        %1164 = vmatprep.subr.mxu0 0.0
        %1165 = vmatpush2.msra.mxu0 0.0
        %1166 = vmatprep.subr.mxu0 0.0
        %1167 = vmatpush2.msra.mxu0 0.0
        %1168 = vmatprep.subr.mxu0 0.0
        %1169 = vmatpush2.msra.mxu0 0.0
        %1170 = vmatprep.subr.mxu0 0.0
        %1171 = vmatpush2.msra.mxu0 0.0
        %1172 = vmatprep.subr.mxu0 0.0
        %1173 = vmatpush2.msra.mxu0 0.0
        %1174 = vmatprep.subr.mxu0 0.0
        %1175 = vmatpush2.msra.mxu0 0.0
        %1176 = vmatprep.subr.mxu0 0.0
        %1177 = vmatpush2.msra.mxu0 0.0
        %1178 = vmatprep.mubr.f32.mxu0 0.0
        %1179 = vmatmul.mubr.f32.gmra.mxu0 %v1093
        %v1180 = vpop.f32.mrf.mxu0
        %v1181 = vadd.f32 %v1113, %v1180
        %v1182 = vpop.f32.mrf.mxu0
        %1183 = vdwg.mxu0
        %v1184 = vadd.f32 %v1181, %v1008
        %v1185 = vsel %vm333, %v1184, 0.0
        %1186 = vadd.xlane.f32.xlu0 %v1185
        %v1187 = vpop.xlane.xlu0 %1186
        %v1188 = vmul.f32 %v1187, %v988
        %v1189 = vsub.f32 %v1184, %v1188
        %v1190 = vmul.f32 %v1189, %v1189
        %v1191 = vsel %vm333, %v1190, 0.0
        %1192 = vadd.xlane.f32.xlu0 %v1191
        %v1193 = vpop.xlane.xlu0 %1192
        %v1194 = vmul.f32 %v1193, %v988
        %v1195 = vadd.f32 %v1194, 1e-05
        %v1196 = vrsqrt.pop %v1195
        %v1197 = vmul.f32 %v1189, %v1196
        %v1198 = vmul.f32 %v1197, %v1002
        %v1199 = vadd.f32 %v1198, %v1007
        %1200 = vst.msk [vmem:[%s323] sm:$0xff] %vm333, %v1199
        %s1201 = sand.u32 %s225, 1
        %s1202 = scalar_lea.sflag [#allocation4], %s1201
        %s1203 = sand.u32 %s225, 1
        %s1204 = smul.addr %s1203, 8
        %s1205 = scalar_lea.vmem [#allocation3], %s1204
        // Predicated region
        $region57: #{tpu_custom_call.1} parent=55 // pred_check
          %p1206 = pneg %p235
        $region58: #{tpu_custom_call.1} parent=55 // pred_check_branch
          %1208 = sbr.rel (%p1206) target = $region60
        $region59: #{tpu_custom_call.1} parent=55 // pred_region
          %s1210 = ssub.s32 128, 128
          %1211 = vsyncadd %s1202, %s1210
          %s1212 = smul.addr %s23, 128
          %s1213 = scalar_lea.hbm %s9, %s1212
          %s1215 = sshll.u32 %s1205, 4
          %s1216 = int_to_ptr.vmem [resolvable:$true] %s1215
          %1218 = dma.vmem_to_hbm [thread:$0]  %s1216, 128, %s1213, %s1202
        $region60: #{tpu_custom_call.1} parent=55 // pred_fallthru
          _
      $region56: #{tpu_custom_call.1} parent=5 // pred_fallthru
        _
      %p1219 = scmp.le.s32.totalorder 2, %s18
      // Predicated region
      $region61: #{tpu_custom_call.1} parent=5 // pred_check
        %p1220 = pneg %p1219
      $region62: #{tpu_custom_call.1} parent=5 // pred_check_branch
        %1222 = sbr.rel (%p1220) target = $region64
      $region63: #{tpu_custom_call.1} parent=5 // pred_region
        %s1223 = ssub.s32 %s18, 2
        // Predicated region
        $region65: #{tpu_custom_call.1} parent=63 // pred_check
          %p1224 = pneg %p241
        $region66: #{tpu_custom_call.1} parent=63 // pred_check_branch
          %1226 = sbr.rel (%p1224) target = $region68
        $region67: #{tpu_custom_call.1} parent=63 // pred_region
          %s1227 = sand.u32 %s226, 1
          %s1228 = scalar_lea.sflag [#allocation4], %s1227
          %s1229 = sand.u32 %s226, 1
          %s1230 = smul.addr %s1229, 8
          %s1231 = scalar_lea.vmem [#allocation3], %s1230
          %1232 = dma.done %s1228, 128
        $region68: #{tpu_custom_call.1} parent=63 // pred_fallthru
          _
      $region64: #{tpu_custom_call.1} parent=5 // pred_fallthru
        _
    $region6: #{tpu_custom_call.1} parent=1 // loop_footer
      %s22 = sadd.s32 1, %s18
    $region7: #{tpu_custom_call.1} parent=1 // loop_footer_branch
      %17 = sbr.rel target = $region3
    $region8: #{tpu_custom_call.1} parent=1 // loop_exit
      _
    %1233 = vsyncpa [#allocation4], 1
    %s1234 = scalar_lea.sflag [#allocation4], 1
    %1235 = vsyncpa %s1234, 1

</llo_original>
